<compile_context>
chip_gen: v6e
topology: v6e:2x2x1
jax: 0.10.0
libtpu: 0.0.40
codegen_flags: <defaults>
</compile_context>

<pallas_src>
import functools

import jax
import jax.numpy as jnp
from jax.experimental import pallas as pl
from jax.experimental.pallas import tpu as pltpu

NUM_CATEGORIES = 10
USE_NORMAL = True
INPUT_NC = 3 * USE_NORMAL          # normal features
IN_CH = INPUT_NC + 3               # xyz is concatenated with the features
HIDDEN = [16, 32, 32, 32]          # num_layers = 4 shared-MLP stages


def _pointnet2_kernel(lab_ref, pos_ref, nrm_ref,
                      w1p_ref, w1n_ref, b1_ref,
                      w2_ref, b2_ref, w3_ref, b3_ref, w4_ref, b4_ref,
                      wc_ref, bc_ref,
                      logp_ref, loss_ref,
                      pool_ref,
                      *, B, n_tiles):
    """One grid step = one (3, TILE_N) tile of one point cloud.

    lab_ref : (1, B)               i32  class labels
    pos_ref : (3, TILE_N)          f32  xyz of current tile (squeezed batch dim)
    nrm_ref : (3, TILE_N)          f32  normals of current tile
    w*_ref  : (C_out, C_in) f32 weights / (C_out, 1) biases (transposed layout)
    logp_ref: (NUM_CATEGORIES, B)  f32  log-softmax (transposed; wrapper .T)
    loss_ref: (1, 1)               f32  NLL loss (mean over batch)
    pool_ref: (HIDDEN[-1], B)      f32  scratch: per-cloud global max pool
    """
    b = pl.program_id(0)
    t = pl.program_id(1)

    @pl.when((b == 0) & (t == 0))
    def _init():
        pool_ref[...] = jnp.full(pool_ref.shape, -jnp.inf, jnp.float32)

    # Fused shared-MLP chain on the current tile (all intermediates on-register).
    h = jnp.maximum(
        jnp.dot(w1p_ref[...], pos_ref[...], preferred_element_type=jnp.float32)
        + jnp.dot(w1n_ref[...], nrm_ref[...], preferred_element_type=jnp.float32)
        + b1_ref[...], 0.0)
    for w_ref, bias_ref in ((w2_ref, b2_ref), (w3_ref, b3_ref), (w4_ref, b4_ref)):
        h = jnp.maximum(
            jnp.dot(w_ref[...], h, preferred_element_type=jnp.float32)
            + bias_ref[...], 0.0)                        # (HIDDEN[i], TILE_N)

    # Global max-pool: fold this tile's lane-axis max into pool column b.
    tile_max = jnp.max(h, axis=1, keepdims=True)         # (HIDDEN[-1], 1)
    col = jax.lax.broadcasted_iota(jnp.int32, pool_ref.shape, 1)
    pool_ref[...] = jnp.where(col == b,
                              jnp.maximum(pool_ref[...], tile_max),
                              pool_ref[...])

    # Classifier head + LogSoftmax + NLL only on the final grid step.
    @pl.when((b == B - 1) & (t == n_tiles - 1))
    def _epilogue():
        g = pool_ref[...]                                # (HIDDEN[-1], B)
        logits = (jnp.dot(wc_ref[...], g, preferred_element_type=jnp.float32)
                  + bc_ref[...])                         # (NUM_CATEGORIES, B)
        m = jnp.max(logits, axis=0, keepdims=True)
        lse = m + jnp.log(jnp.sum(jnp.exp(logits - m), axis=0, keepdims=True))
        logp = logits - lse
        logp_ref[...] = logp
        cls = jax.lax.broadcasted_iota(jnp.int32, logp.shape, 0)
        onehot = (cls == lab_ref[...]).astype(jnp.float32)
        loss = -jnp.sum(logp * onehot) / jnp.float32(B)
        loss_ref[...] = jnp.reshape(loss, (1, 1))


def _pick_tile(n):
    for t in (512, 256, 128):
        if n >= t and n % t == 0:
            return t
    return n   # small clouds: one full-extent tile (block dim == array dim)


def pointnet2_classifier(pos, normals, y, params, tile_n=None):
    """pos: (B,N,3) f32, normals: (B,N,3) f32, y: (B,1) or (B,) int."""
    B, N, _ = pos.shape
    if tile_n is None:
        tile_n = _pick_tile(N)
    assert N % tile_n == 0, "point count must be divisible by the tile size"
    n_tiles = N // tile_n

    # Channels-first (NCW, PyTorch Conv1d layout) => lane-dense (C, TILE) tiles.
    pos_t = jnp.transpose(pos, (0, 2, 1))                # (B, 3, N)
    nrm_t = jnp.transpose(normals, (0, 2, 1))            # (B, 3, N)
    labels = jnp.reshape(y, (-1,)).astype(jnp.int32).reshape(1, B)  # data.y.squeeze()

    (w1, b1), (w2, b2), (w3, b3), (w4, b4), (wc, bc) = params
    # Transposed (C_out, C_in) weights / (C_out, 1) biases; xyz/normal halves of
    # layer 1 split so no concat(pos, normals) is materialised in the wrapper.
    args = (labels, pos_t, nrm_t,
            w1[:3].T, w1[3:].T, b1.reshape(-1, 1),
            w2.T, b2.reshape(-1, 1),
            w3.T, b3.reshape(-1, 1),
            w4.T, b4.reshape(-1, 1),
            wc.T, bc.reshape(-1, 1))

    def resident(shape):   # full-array block, constant index -> stays in VMEM
        return pl.BlockSpec(shape, lambda b, t: (0, 0))

    h1, h2, h3, h4 = HIDDEN
    in_specs = [
        resident((1, B)),                                          # labels
        pl.BlockSpec((None, 3, tile_n), lambda b, t: (b, 0, t)),   # pos tile
        pl.BlockSpec((None, 3, tile_n), lambda b, t: (b, 0, t)),   # normal tile
        resident((h1, 3)), resident((h1, 3)), resident((h1, 1)),
        resident((h2, h1)), resident((h2, 1)),
        resident((h3, h2)), resident((h3, 1)),
        resident((h4, h3)), resident((h4, 1)),
        resident((NUM_CATEGORIES, h4)), resident((NUM_CATEGORIES, 1)),
    ]

    kernel = functools.partial(_pointnet2_kernel, B=B, n_tiles=n_tiles)
    logp_t, loss = pl.pallas_call(
        kernel,
        out_shape=(jax.ShapeDtypeStruct((NUM_CATEGORIES, B), jnp.float32),
                   jax.ShapeDtypeStruct((1, 1), jnp.float32)),
        grid_spec=pltpu.PrefetchScalarGridSpec(
            num_scalar_prefetch=0,
            grid=(B, n_tiles),
            in_specs=in_specs,
            out_specs=(pl.BlockSpec((NUM_CATEGORIES, B), lambda b, t: (0, 0)),
                       pl.BlockSpec((1, 1), lambda b, t: (0, 0))),
            scratch_shapes=[pltpu.VMEM((HIDDEN[-1], B), jnp.float32)]),
        compiler_params=pltpu.CompilerParams(
            dimension_semantics=("arbitrary", "arbitrary"),
            vmem_limit_bytes=32 * 1024 * 1024),
    )(*args)
    return logp_t.T, loss[0, 0]


def _reference(pos, normals, y, params):
    """Pure-JAX reference of the same forward pass."""
    B, N, _ = pos.shape
    h = jnp.concatenate([pos, normals], axis=-1).reshape(B * N, IN_CH)
    (w1, b1), (w2, b2), (w3, b3), (w4, b4), (wc, bc) = params
    for w, b in ((w1, b1), (w2, b2), (w3, b3), (w4, b4)):
        h = jnp.maximum(h @ w + b, 0.0)
    g = jnp.max(h.reshape(B, N, -1), axis=1)
    logits = g @ wc + bc
    logp = jax.nn.log_softmax(logits, axis=-1)
    labels = jnp.reshape(y, (-1,))
    loss = -jnp.mean(logp[jnp.arange(B), labels])
    return logp, loss


def init_params(key):
    dims = [IN_CH] + HIDDEN
    params = []
    keys = jax.random.split(key, len(HIDDEN) + 1)
    for i in range(len(HIDDEN)):
        w = 0.1 * jax.random.normal(keys[i], (dims[i], dims[i + 1]), jnp.float32)
        b = jnp.full((1, dims[i + 1]), 0.01, jnp.float32)
        params.append((w, b))
    wc = 0.1 * jax.random.normal(keys[-1], (HIDDEN[-1], NUM_CATEGORIES), jnp.float32)
    bc = jnp.zeros((1, NUM_CATEGORIES), jnp.float32)
    params.append((wc, bc))
    return params


if __name__ == "__main__":
    key = jax.random.PRNGKey(0)
    k_pos, k_nrm, k_y, k_par = jax.random.split(key, 4)

    B, N = 2, 256                      # small demo; tile_n=128 -> grid (2, 2)
    pos = jax.random.normal(k_pos, (B, N, 3), jnp.float32)
    normals = jax.random.normal(k_nrm, (B, N, 3), jnp.float32)
    y = jax.random.randint(k_y, (B, 1), 0, NUM_CATEGORIES, jnp.int32)
    params = init_params(k_par)

    run = jax.jit(functools.partial(pointnet2_classifier, tile_n=128))
    logp, loss = run(pos, normals, y, params)
    jax.block_until_ready((logp, loss))

    ref_logp, ref_loss = _reference(pos, normals, y, params)
    assert jnp.allclose(logp, ref_logp, atol=1e-4, rtol=1e-4), "log_softmax mismatch"
    assert jnp.allclose(loss, ref_loss, atol=1e-4, rtol=1e-4), "nll_loss mismatch"

    print("KERNEL_OK")
</pallas_src>

<mosaic_0001>
module attributes {stable_mosaic.version = 11 : i64} {
  func.func @_pointnet2_kernel(%arg0: i32, %arg1: i32, %arg2: memref<1x2xi32, #tpu.memory_space<vmem>>, %arg3: memref<1x3x128xf32, #tpu.memory_space<vmem>>, %arg4: memref<1x3x128xf32, #tpu.memory_space<vmem>>, %arg5: memref<16x3xf32, #tpu.memory_space<vmem>>, %arg6: memref<16x3xf32, #tpu.memory_space<vmem>>, %arg7: memref<16x1xf32, #tpu.memory_space<vmem>>, %arg8: memref<32x16xf32, #tpu.memory_space<vmem>>, %arg9: memref<32x1xf32, #tpu.memory_space<vmem>>, %arg10: memref<32x32xf32, #tpu.memory_space<vmem>>, %arg11: memref<32x1xf32, #tpu.memory_space<vmem>>, %arg12: memref<32x32xf32, #tpu.memory_space<vmem>>, %arg13: memref<32x1xf32, #tpu.memory_space<vmem>>, %arg14: memref<10x32xf32, #tpu.memory_space<vmem>>, %arg15: memref<10x1xf32, #tpu.memory_space<vmem>>, %arg16: memref<10x2xf32, #tpu.memory_space<vmem>>, %arg17: memref<1x1xf32, #tpu.memory_space<vmem>>, %arg18: memref<32x2xf32, #tpu.memory_space<vmem>>) attributes {dimension_semantics = [#tpu.dimension_semantics<arbitrary>, #tpu.dimension_semantics<arbitrary>], iteration_bounds = array<i64: 2, 2>, scalar_prefetch = 0 : i64, scratch_operands = 1 : i64, tpu.core_type = #tpu.core_type<tc>, window_params = [{pipeline_mode = #tpu.pipeline_mode<synchronous>, transform_indices = @transform_0, window_bounds = array<i64: 1, 2>}, {transform_indices = @transform_1, window_bounds = array<i64: 1, 3, 128>}, {transform_indices = @transform_2, window_bounds = array<i64: 1, 3, 128>}, {pipeline_mode = #tpu.pipeline_mode<synchronous>, transform_indices = @transform_3, window_bounds = array<i64: 16, 3>}, {pipeline_mode = #tpu.pipeline_mode<synchronous>, transform_indices = @transform_4, window_bounds = array<i64: 16, 3>}, {pipeline_mode = #tpu.pipeline_mode<synchronous>, transform_indices = @transform_5, window_bounds = array<i64: 16, 1>}, {pipeline_mode = #tpu.pipeline_mode<synchronous>, transform_indices = @transform_6, window_bounds = array<i64: 32, 16>}, {pipeline_mode = #tpu.pipeline_mode<synchronous>, transform_indices = @transform_7, window_bounds = array<i64: 32, 1>}, {pipeline_mode = #tpu.pipeline_mode<synchronous>, transform_indices = @transform_8, window_bounds = array<i64: 32, 32>}, {pipeline_mode = #tpu.pipeline_mode<synchronous>, transform_indices = @transform_9, window_bounds = array<i64: 32, 1>}, {pipeline_mode = #tpu.pipeline_mode<synchronous>, transform_indices = @transform_10, window_bounds = array<i64: 32, 32>}, {pipeline_mode = #tpu.pipeline_mode<synchronous>, transform_indices = @transform_11, window_bounds = array<i64: 32, 1>}, {pipeline_mode = #tpu.pipeline_mode<synchronous>, transform_indices = @transform_12, window_bounds = array<i64: 10, 32>}, {pipeline_mode = #tpu.pipeline_mode<synchronous>, transform_indices = @transform_13, window_bounds = array<i64: 10, 1>}, {pipeline_mode = #tpu.pipeline_mode<synchronous>, transform_indices = @transform_14, window_bounds = array<i64: 10, 2>}, {pipeline_mode = #tpu.pipeline_mode<synchronous>, transform_indices = @transform_15, window_bounds = array<i64: 1, 1>}]} {
    %c0_i32 = arith.constant 0 : i32
    %0 = arith.cmpi eq, %arg0, %c0_i32 : i32
    %c0_i32_0 = arith.constant 0 : i32
    %1 = arith.cmpi eq, %arg1, %c0_i32_0 : i32
    %2 = arith.andi %0, %1 : i1
    %3 = arith.extui %2 : i1 to i32
    %c0_i32_1 = arith.constant 0 : i32
    %4 = arith.cmpi ne, %3, %c0_i32_1 : i32
    scf.if %4 {
      %cst_42 = arith.constant 0xFF800000 : f32
      %56 = vector.broadcast %cst_42 : f32 to vector<32x2xf32>
      %c0_43 = arith.constant 0 : index
      %c0_44 = arith.constant 0 : index
      %57 = vector.load %arg18[%c0_43, %c0_44] : memref<32x2xf32, #tpu.memory_space<vmem>>, vector<32x2xf32>
      tpu.vector_store %arg18[%c0_43, %c0_44], %56 {strides = array<i32>} : memref<32x2xf32, #tpu.memory_space<vmem>>, vector<32x2xf32>,
    } else {
    }
    %c0 = arith.constant 0 : index
    %c0_2 = arith.constant 0 : index
    %5 = vector.load %arg5[%c0, %c0_2] : memref<16x3xf32, #tpu.memory_space<vmem>>, vector<16x3xf32>
    %c0_3 = arith.constant 0 : index
    %c0_4 = arith.constant 0 : index
    %c0_5 = arith.constant 0 : index
    %6 = vector.load %arg3[%c0_3, %c0_4, %c0_5] : memref<1x3x128xf32, #tpu.memory_space<vmem>>, vector<1x3x128xf32>
    %7 = vector.shape_cast %6 : vector<1x3x128xf32> to vector<3x128xf32>
    %cst = arith.constant dense<0.000000e+00> : vector<16x128xf32>
    %8 = tpu.matmul %5, %7, %cst {dimension_numbers = #tpu.dot_dimension_numbers<[1], [0], [0], [1], [0, 0, 1, 1], [], []>} : vector<16x3xf32>, vector<3x128xf32>, vector<16x128xf32> -> vector<16x128xf32>
    %c0_6 = arith.constant 0 : index
    %c0_7 = arith.constant 0 : index
    %9 = vector.load %arg6[%c0_6, %c0_7] : memref<16x3xf32, #tpu.memory_space<vmem>>, vector<16x3xf32>
    %c0_8 = arith.constant 0 : index
    %c0_9 = arith.constant 0 : index
    %c0_10 = arith.constant 0 : index
    %10 = vector.load %arg4[%c0_8, %c0_9, %c0_10] : memref<1x3x128xf32, #tpu.memory_space<vmem>>, vector<1x3x128xf32>
    %11 = vector.shape_cast %10 : vector<1x3x128xf32> to vector<3x128xf32>
    %cst_11 = arith.constant dense<0.000000e+00> : vector<16x128xf32>
    %12 = tpu.matmul %9, %11, %cst_11 {dimension_numbers = #tpu.dot_dimension_numbers<[1], [0], [0], [1], [0, 0, 1, 1], [], []>} : vector<16x3xf32>, vector<3x128xf32>, vector<16x128xf32> -> vector<16x128xf32>
    %13 = arith.addf %8, %12 : vector<16x128xf32>
    %c0_12 = arith.constant 0 : index
    %c0_13 = arith.constant 0 : index
    %14 = vector.load %arg7[%c0_12, %c0_13] : memref<16x1xf32, #tpu.memory_space<vmem>>, vector<16x1xf32>
    %15 = vector.broadcast %14 : vector<16x1xf32> to vector<16x128xf32>
    %16 = arith.addf %13, %15 : vector<16x128xf32>
    %cst_14 = arith.constant 0.000000e+00 : f32
    %17 = vector.broadcast %cst_14 : f32 to vector<16x128xf32>
    %18 = arith.maximumf %16, %17 : vector<16x128xf32>
    %c0_15 = arith.constant 0 : index
    %c0_16 = arith.constant 0 : index
    %19 = vector.load %arg8[%c0_15, %c0_16] : memref<32x16xf32, #tpu.memory_space<vmem>>, vector<32x16xf32>
    %cst_17 = arith.constant dense<0.000000e+00> : vector<32x128xf32>
    %20 = tpu.matmul %19, %18, %cst_17 {dimension_numbers = #tpu.dot_dimension_numbers<[1], [0], [0], [1], [0, 0, 1, 1], [], []>} : vector<32x16xf32>, vector<16x128xf32>, vector<32x128xf32> -> vector<32x128xf32>
    %c0_18 = arith.constant 0 : index
    %c0_19 = arith.constant 0 : index
    %21 = vector.load %arg9[%c0_18, %c0_19] : memref<32x1xf32, #tpu.memory_space<vmem>>, vector<32x1xf32>
    %22 = vector.broadcast %21 : vector<32x1xf32> to vector<32x128xf32>
    %23 = arith.addf %20, %22 : vector<32x128xf32>
    %cst_20 = arith.constant 0.000000e+00 : f32
    %24 = vector.broadcast %cst_20 : f32 to vector<32x128xf32>
    %25 = arith.maximumf %23, %24 : vector<32x128xf32>
    %c0_21 = arith.constant 0 : index
    %c0_22 = arith.constant 0 : index
    %26 = vector.load %arg10[%c0_21, %c0_22] : memref<32x32xf32, #tpu.memory_space<vmem>>, vector<32x32xf32>
    %cst_23 = arith.constant dense<0.000000e+00> : vector<32x128xf32>
    %27 = tpu.matmul %26, %25, %cst_23 {dimension_numbers = #tpu.dot_dimension_numbers<[1], [0], [0], [1], [0, 0, 1, 1], [], []>} : vector<32x32xf32>, vector<32x128xf32>, vector<32x128xf32> -> vector<32x128xf32>
    %c0_24 = arith.constant 0 : index
    %c0_25 = arith.constant 0 : index
    %28 = vector.load %arg11[%c0_24, %c0_25] : memref<32x1xf32, #tpu.memory_space<vmem>>, vector<32x1xf32>
    %29 = vector.broadcast %28 : vector<32x1xf32> to vector<32x128xf32>
    %30 = arith.addf %27, %29 : vector<32x128xf32>
    %cst_26 = arith.constant 0.000000e+00 : f32
    %31 = vector.broadcast %cst_26 : f32 to vector<32x128xf32>
    %32 = arith.maximumf %30, %31 : vector<32x128xf32>
    %c0_27 = arith.constant 0 : index
    %c0_28 = arith.constant 0 : index
    %33 = vector.load %arg12[%c0_27, %c0_28] : memref<32x32xf32, #tpu.memory_space<vmem>>, vector<32x32xf32>
    %cst_29 = arith.constant dense<0.000000e+00> : vector<32x128xf32>
    %34 = tpu.matmul %33, %32, %cst_29 {dimension_numbers = #tpu.dot_dimension_numbers<[1], [0], [0], [1], [0, 0, 1, 1], [], []>} : vector<32x32xf32>, vector<32x128xf32>, vector<32x128xf32> -> vector<32x128xf32>
    %c0_30 = arith.constant 0 : index
    %c0_31 = arith.constant 0 : index
    %35 = vector.load %arg13[%c0_30, %c0_31] : memref<32x1xf32, #tpu.memory_space<vmem>>, vector<32x1xf32>
    %36 = vector.broadcast %35 : vector<32x1xf32> to vector<32x128xf32>
    %37 = arith.addf %34, %36 : vector<32x128xf32>
    %cst_32 = arith.constant 0.000000e+00 : f32
    %38 = vector.broadcast %cst_32 : f32 to vector<32x128xf32>
    %39 = arith.maximumf %37, %38 : vector<32x128xf32>
    %cst_33 = arith.constant dense<0xFF800000> : vector<32xf32>
    %40 = vector.multi_reduction <maximumf>, %39, %cst_33 [1] : vector<32x128xf32> to vector<32xf32>
    %41 = vector.shape_cast %40 : vector<32xf32> to vector<32x1xf32>
    %42 = tpu.iota {dimensions = array<i32: 1>} : vector<32x2xi32>
    %43 = vector.broadcast %arg0 : i32 to vector<32x2xi32>
    %44 = arith.cmpi eq, %42, %43 : vector<32x2xi32>
    %c0_34 = arith.constant 0 : index
    %c0_35 = arith.constant 0 : index
    %45 = vector.load %arg18[%c0_34, %c0_35] : memref<32x2xf32, #tpu.memory_space<vmem>>, vector<32x2xf32>
    %46 = vector.broadcast %41 : vector<32x1xf32> to vector<32x2xf32>
    %47 = arith.maximumf %45, %46 : vector<32x2xf32>
    %c0_36 = arith.constant 0 : index
    %c0_37 = arith.constant 0 : index
    %48 = vector.load %arg18[%c0_36, %c0_37] : memref<32x2xf32, #tpu.memory_space<vmem>>, vector<32x2xf32>
    %49 = arith.select %44, %47, %48 : vector<32x2xi1>, vector<32x2xf32>
    %c0_38 = arith.constant 0 : index
    %c0_39 = arith.constant 0 : index
    %50 = vector.load %arg18[%c0_38, %c0_39] : memref<32x2xf32, #tpu.memory_space<vmem>>, vector<32x2xf32>
    tpu.vector_store %arg18[%c0_38, %c0_39], %49 {strides = array<i32>} : memref<32x2xf32, #tpu.memory_space<vmem>>, vector<32x2xf32>,
    %c1_i32 = arith.constant 1 : i32
    %51 = arith.cmpi eq, %arg0, %c1_i32 : i32
    %c1_i32_40 = arith.constant 1 : i32
    %52 = arith.cmpi eq, %arg1, %c1_i32_40 : i32
    %53 = arith.andi %51, %52 : i1
    %54 = arith.extui %53 : i1 to i32
    %c0_i32_41 = arith.constant 0 : i32
    %55 = arith.cmpi ne, %54, %c0_i32_41 : i32
    scf.if %55 {
      %c0_42 = arith.constant 0 : index
      %c0_43 = arith.constant 0 : index
      %56 = vector.load %arg18[%c0_42, %c0_43] : memref<32x2xf32, #tpu.memory_space<vmem>>, vector<32x2xf32>
      %c0_44 = arith.constant 0 : index
      %c0_45 = arith.constant 0 : index
      %57 = vector.load %arg14[%c0_44, %c0_45] : memref<10x32xf32, #tpu.memory_space<vmem>>, vector<10x32xf32>
      %cst_46 = arith.constant dense<0.000000e+00> : vector<10x2xf32>
      %58 = tpu.matmul %57, %56, %cst_46 {dimension_numbers = #tpu.dot_dimension_numbers<[1], [0], [0], [1], [0, 0, 1, 1], [], []>} : vector<10x32xf32>, vector<32x2xf32>, vector<10x2xf32> -> vector<10x2xf32>
      %c0_47 = arith.constant 0 : index
      %c0_48 = arith.constant 0 : index
      %59 = vector.load %arg15[%c0_47, %c0_48] : memref<10x1xf32, #tpu.memory_space<vmem>>, vector<10x1xf32>
      %60 = vector.broadcast %59 : vector<10x1xf32> to vector<10x2xf32>
      %61 = arith.addf %58, %60 : vector<10x2xf32>
      %cst_49 = arith.constant dense<0xFF800000> : vector<2xf32>
      %62 = vector.multi_reduction <maximumf>, %61, %cst_49 [0] : vector<10x2xf32> to vector<2xf32>
      %63 = vector.shape_cast %62 : vector<2xf32> to vector<1x2xf32>
      %64 = vector.broadcast %63 : vector<1x2xf32> to vector<10x2xf32>
      %65 = arith.subf %61, %64 : vector<10x2xf32>
      %66 = math.exp %65 : vector<10x2xf32>
      %cst_50 = arith.constant dense<0.000000e+00> : vector<2xf32>
      %67 = vector.multi_reduction <add>, %66, %cst_50 [0] : vector<10x2xf32> to vector<2xf32>
      %68 = vector.shape_cast %67 : vector<2xf32> to vector<1x2xf32>
      %69 = math.log %68 : vector<1x2xf32>
      %70 = arith.addf %63, %69 : vector<1x2xf32>
      %71 = vector.broadcast %70 : vector<1x2xf32> to vector<10x2xf32>
      %72 = arith.subf %61, %71 : vector<10x2xf32>
      %c0_51 = arith.constant 0 : index
      %c0_52 = arith.constant 0 : index
      %73 = vector.load %arg16[%c0_51, %c0_52] : memref<10x2xf32, #tpu.memory_space<vmem>>, vector<10x2xf32>
      tpu.vector_store %arg16[%c0_51, %c0_52], %72 {strides = array<i32>} : memref<10x2xf32, #tpu.memory_space<vmem>>, vector<10x2xf32>,
      %74 = tpu.iota {dimensions = array<i32: 0>} : vector<10x2xi32>
      %c0_53 = arith.constant 0 : index
      %c0_54 = arith.constant 0 : index
      %75 = vector.load %arg2[%c0_53, %c0_54] : memref<1x2xi32, #tpu.memory_space<vmem>>, vector<1x2xi32>
      %76 = vector.broadcast %75 : vector<1x2xi32> to vector<10x2xi32>
      %77 = arith.cmpi eq, %74, %76 : vector<10x2xi32>
      %78 = arith.extui %77 : vector<10x2xi1> to vector<10x2xi32>
      %79 = arith.sitofp %78 : vector<10x2xi32> to vector<10x2xf32>
      %80 = arith.mulf %72, %79 : vector<10x2xf32>
      %81 = vector.shape_cast %80 : vector<10x2xf32> to vector<1x10x2xf32>
      %cst_55 = arith.constant dense<0.000000e+00> : vector<1xf32>
      %82 = vector.multi_reduction <add>, %81, %cst_55 [1, 2] : vector<1x10x2xf32> to vector<1xf32>
      %83 = vector.shape_cast %82 : vector<1xf32> to vector<1x1x1xf32>
      %84 = vector.extract %83[0, 0, 0] : f32 from vector<1x1x1xf32>
      %cst_56 = arith.constant 0.000000e+00 : f32
      %85 = arith.subf %cst_56, %84 : f32
      %cst_57 = arith.constant 2.000000e+00 : f32
      %86 = arith.divf %85, %cst_57 : f32
      %87 = vector.broadcast %86 : f32 to vector<1x1xf32>
      %c0_58 = arith.constant 0 : index
      %c0_59 = arith.constant 0 : index
      %88 = vector.load %arg17[%c0_58, %c0_59] : memref<1x1xf32, #tpu.memory_space<vmem>>, vector<1x1xf32>
      tpu.vector_store %arg17[%c0_58, %c0_59], %87 {strides = array<i32>} : memref<1x1xf32, #tpu.memory_space<vmem>>, vector<1x1xf32>,
    } else {
    }
    return
  }
  func.func @transform_0(%arg0: i32, %arg1: i32) -> (i32, i32) {
    %c0_i32 = arith.constant 0 : i32
    %c0_i32_0 = arith.constant 0 : i32
    %c0_i32_1 = arith.constant 0 : i32
    return %c0_i32, %c0_i32_0 : i32, i32
  }
  func.func @transform_1(%arg0: i32, %arg1: i32) -> (i32, i32, i32) {
    %c0_i32 = arith.constant 0 : i32
    %c0_i32_0 = arith.constant 0 : i32
    return %arg0, %c0_i32, %arg1 : i32, i32, i32
  }
  func.func @transform_2(%arg0: i32, %arg1: i32) -> (i32, i32, i32) {
    %c0_i32 = arith.constant 0 : i32
    %c0_i32_0 = arith.constant 0 : i32
    return %arg0, %c0_i32, %arg1 : i32, i32, i32
  }
  func.func @transform_3(%arg0: i32, %arg1: i32) -> (i32, i32) {
    %c0_i32 = arith.constant 0 : i32
    %c0_i32_0 = arith.constant 0 : i32
    %c0_i32_1 = arith.constant 0 : i32
    return %c0_i32, %c0_i32_0 : i32, i32
  }
  func.func @transform_4(%arg0: i32, %arg1: i32) -> (i32, i32) {
    %c0_i32 = arith.constant 0 : i32
    %c0_i32_0 = arith.constant 0 : i32
    %c0_i32_1 = arith.constant 0 : i32
    return %c0_i32, %c0_i32_0 : i32, i32
  }
  func.func @transform_5(%arg0: i32, %arg1: i32) -> (i32, i32) {
    %c0_i32 = arith.constant 0 : i32
    %c0_i32_0 = arith.constant 0 : i32
    %c0_i32_1 = arith.constant 0 : i32
    return %c0_i32, %c0_i32_0 : i32, i32
  }
  func.func @transform_6(%arg0: i32, %arg1: i32) -> (i32, i32) {
    %c0_i32 = arith.constant 0 : i32
    %c0_i32_0 = arith.constant 0 : i32
    %c0_i32_1 = arith.constant 0 : i32
    return %c0_i32, %c0_i32_0 : i32, i32
  }
  func.func @transform_7(%arg0: i32, %arg1: i32) -> (i32, i32) {
    %c0_i32 = arith.constant 0 : i32
    %c0_i32_0 = arith.constant 0 : i32
    %c0_i32_1 = arith.constant 0 : i32
    return %c0_i32, %c0_i32_0 : i32, i32
  }
  func.func @transform_8(%arg0: i32, %arg1: i32) -> (i32, i32) {
    %c0_i32 = arith.constant 0 : i32
    %c0_i32_0 = arith.constant 0 : i32
    %c0_i32_1 = arith.constant 0 : i32
    return %c0_i32, %c0_i32_0 : i32, i32
  }
  func.func @transform_9(%arg0: i32, %arg1: i32) -> (i32, i32) {
    %c0_i32 = arith.constant 0 : i32
    %c0_i32_0 = arith.constant 0 : i32
    %c0_i32_1 = arith.constant 0 : i32
    return %c0_i32, %c0_i32_0 : i32, i32
  }
  func.func @transform_10(%arg0: i32, %arg1: i32) -> (i32, i32) {
    %c0_i32 = arith.constant 0 : i32
    %c0_i32_0 = arith.constant 0 : i32
    %c0_i32_1 = arith.constant 0 : i32
    return %c0_i32, %c0_i32_0 : i32, i32
  }
  func.func @transform_11(%arg0: i32, %arg1: i32) -> (i32, i32) {
    %c0_i32 = arith.constant 0 : i32
    %c0_i32_0 = arith.constant 0 : i32
    %c0_i32_1 = arith.constant 0 : i32
    return %c0_i32, %c0_i32_0 : i32, i32
  }
  func.func @transform_12(%arg0: i32, %arg1: i32) -> (i32, i32) {
    %c0_i32 = arith.constant 0 : i32
    %c0_i32_0 = arith.constant 0 : i32
    %c0_i32_1 = arith.constant 0 : i32
    return %c0_i32, %c0_i32_0 : i32, i32
  }
  func.func @transform_13(%arg0: i32, %arg1: i32) -> (i32, i32) {
    %c0_i32 = arith.constant 0 : i32
    %c0_i32_0 = arith.constant 0 : i32
    %c0_i32_1 = arith.constant 0 : i32
    return %c0_i32, %c0_i32_0 : i32, i32
  }
  func.func @transform_14(%arg0: i32, %arg1: i32) -> (i32, i32) {
    %c0_i32 = arith.constant 0 : i32
    %c0_i32_0 = arith.constant 0 : i32
    %c0_i32_1 = arith.constant 0 : i32
    return %c0_i32, %c0_i32_0 : i32, i32
  }
  func.func @transform_15(%arg0: i32, %arg1: i32) -> (i32, i32) {
    %c0_i32 = arith.constant 0 : i32
    %c0_i32_0 = arith.constant 0 : i32
    %c0_i32_1 = arith.constant 0 : i32
    return %c0_i32, %c0_i32_0 : i32, i32
  }
}

</mosaic_0001>

<llo_original>
// kernel: pointnet2_classifier.1
$region0: #{pointnet2_classifier.1}
  #allocation0 [shape = 'u32[]', space=smem, size = 0x4, offset = 0x4, fixed_abs, tag = 'smem constant byte address 0x4 - core index']
  #allocation1 [shape = 'u32[144,128]{1,0:T(1,128)}', space=vmem, size = 0x12000, scoped, tag = 'internal scratch']
  #allocation2 [shape = 'f32[32,2]{1,0:T(8,128)}', space=vmem, size = 0x4000, scoped, tag = 'scratch operand']
  %s0 = inlined_call_operand.vmem [shape: s32[1,2], index: 0, kind: input, shape index: {}]
  %s1 = inlined_call_operand.vmem [shape: f32[2,3,256], index: 1, kind: input, shape index: {}]
  %s2 = inlined_call_operand.vmem [shape: f32[2,3,256], index: 2, kind: input, shape index: {}]
  %s3 = inlined_call_operand.vmem [shape: f32[16,3], index: 3, kind: input, shape index: {}]
  %s4 = inlined_call_operand.vmem [shape: f32[16,3], index: 4, kind: input, shape index: {}]
  %s5 = inlined_call_operand.vmem [shape: f32[16,1], index: 5, kind: input, shape index: {}]
  %s6 = inlined_call_operand.vmem [shape: f32[32,16], index: 6, kind: input, shape index: {}]
  %s7 = inlined_call_operand.vmem [shape: f32[32,1], index: 7, kind: input, shape index: {}]
  %s8 = inlined_call_operand.vmem [shape: f32[32,32], index: 8, kind: input, shape index: {}]
  %s9 = inlined_call_operand.vmem [shape: f32[32,1], index: 9, kind: input, shape index: {}]
  %s10 = inlined_call_operand.vmem [shape: f32[32,32], index: 10, kind: input, shape index: {}]
  %s11 = inlined_call_operand.vmem [shape: f32[32,1], index: 11, kind: input, shape index: {}]
  %s12 = inlined_call_operand.vmem [shape: f32[10,32], index: 12, kind: input, shape index: {}]
  %s13 = inlined_call_operand.vmem [shape: f32[10,1], index: 13, kind: input, shape index: {}]
  %s14 = inlined_call_operand.vmem [shape: f32[10,2], index: 14, kind: output, shape index: {0}]
  %s15 = inlined_call_operand.hbm [shape: f32[1,1], index: 15, kind: output, shape index: {1}]
  %16 = xla_tuple %s14, %s15
  %s17 = sld [smem:[#allocation0]]
  $region105: #{pointnet2_classifier.1} parent=0
    _
  %s19 = ssub.s32 1, %s17
  %s20 = scalar_select 0, %s19, %s17
  $region1: #{pointnet2_classifier.1} parent=0
    #allocation3 [shape = 'u8[512]{0}', space=vmem, size = 0x400, scoped, tag = 'output window, operand 1, single buffered']
    #allocation4 [shape = 's32[2]{0}', space=sflag, size = 0x8, scoped, tag = 'scoped memory for pointnet2_classifier.1']
    %21 = vsyncpa [#allocation4], 0
    loop: start=0, step=1, limit=6
    $region2: #{pointnet2_classifier.1} parent=1 // loop_pre_header
      _
    $region3: #{pointnet2_classifier.1} parent=1 // loop_header
      %s23 = sphi 0, %s27
      %p24 = scmp.ge.s32.totalorder %s23, 6
      %s30 = sphi 0, %s42
      %s31 = sphi 0, %s38
      %s32 = sphi 0, %s30
      %s33 = sphi 0, %s31
      %s34 = sphi 0, %s32
      %s35 = sphi 0, %s33
      %s43 = sphi 0, %s43
      %s45 = sphi 0, %s43
      %s46 = sphi 0, %s45
      %s60 = sphi 0, %s46
      %s68 = sphi 0, %s70
      %s71 = sphi 0, %s68
      %s72 = sphi 0, %s71
      %s88 = sphi 0, %s72
      %s96 = sphi 0, %s98
      %s99 = sphi 0, %s96
      %s100 = sphi 0, %s99
      %s116 = sphi 0, %s100
      %s120 = sphi 0, %s120
      %s122 = sphi 0, %s120
      %s123 = sphi 0, %s122
      %s137 = sphi 0, %s123
      %s141 = sphi 0, %s141
      %s143 = sphi 0, %s141
      %s144 = sphi 0, %s143
      %s158 = sphi 0, %s144
      %s162 = sphi 0, %s162
      %s164 = sphi 0, %s162
      %s165 = sphi 0, %s164
      %s179 = sphi 0, %s165
      %s183 = sphi 0, %s183
      %s185 = sphi 0, %s183
      %s186 = sphi 0, %s185
      %s200 = sphi 0, %s186
      %s204 = sphi 0, %s204
      %s206 = sphi 0, %s204
      %s207 = sphi 0, %s206
      %s221 = sphi 0, %s207
      %s225 = sphi 0, %s225
      %s227 = sphi 0, %s225
      %s228 = sphi 0, %s227
      %s242 = sphi 0, %s228
      %s246 = sphi 0, %s246
      %s248 = sphi 0, %s246
      %s249 = sphi 0, %s248
      %s263 = sphi 0, %s249
      %s267 = sphi 0, %s267
      %s269 = sphi 0, %s267
      %s270 = sphi 0, %s269
      %s284 = sphi 0, %s270
      %s288 = sphi 0, %s288
      %s290 = sphi 0, %s288
      %s291 = sphi 0, %s290
      %s305 = sphi 0, %s291
      %s309 = sphi 0, %s309
      %s311 = sphi 0, %s309
      %s312 = sphi 0, %s311
      %s326 = sphi 0, %s312
      %s330 = sphi 0, %s330
      %s332 = sphi 0, %s330
      %s333 = sphi 0, %s332
      %s347 = sphi 0, %s333
      %s351 = sphi 0, %s351
      %s353 = sphi 0, %s351
      %s354 = sphi 0, %s353
      %s368 = sphi 0, %s354
      %s372 = sphi 0, %s372
      %s374 = sphi 0, %s372
      %s375 = sphi 0, %s374
      %s389 = sphi 0, %s375
    $region4: #{pointnet2_classifier.1} parent=1 // loop_header_branch
      %26 = sbr.rel (%p24) target = $region8
    $region5: #{pointnet2_classifier.1} parent=1 // loop_body
      %s28 = ssub.s32 %s23, 1
      %s29 = ssub.s32 %s23, 2
      %s36 = sadd.s32 1, %s31
      %p37 = scmp.ge.s32.totalorder %s36, 2
      %s38 = scalar_select %p37, 0, %s36
      %s39 = sadd.s32 1, %s30
      %s40 = scalar_select %p37, %s39, %s30
      %p41 = scmp.ge.s32.totalorder %s40, 2
      %s42 = scalar_select %p41, 0, %s40
      %s44 = sadd.s32 %s43, 1
      %p47 = scmp.eq.s32.totalorder %s23, 3
      %p48 = scmp.ne.s32.totalorder %s43, %s45
      %p49 = scmp.eq.s32.totalorder %s23, 0
      %p50 = por %p48, %p49
      %p51 = scmp.ne.s32.totalorder %s43, %s45
      %p52 = scmp.eq.s32.totalorder %s28, 3
      %p53 = por %p51, %p52
      %p54 = scmp.ne.s32.totalorder %s45, %s46
      %p55 = scmp.eq.s32.totalorder %s28, 0
      %p56 = por %p54, %p55
      %p57 = scmp.ne.s32.totalorder %s45, %s46
      %p58 = scmp.eq.s32.totalorder %s29, 3
      %p59 = por %p57, %p58
      %p61 = scmp.ne.s32.totalorder %s46, %s60
      %p62 = scmp.eq.s32.totalorder %s29, 0
      %p63 = por %p61, %p62
      %s64 = ssub.s32 %s30, %s42
      %s65 = ssub.s32 %s31, %s38
      %s66 = sor.u32 %s64, %s65
      %p67 = scmp.eq.s32.totalorder %s66, 0
      %s69 = sadd.s32 %s68, 1
      %s70 = scalar_select %p67, %s68, %s69
      %p73 = pneg %p67
      %p74 = scmp.eq.s32.totalorder %s23, 3
      %p75 = por %p73, %p74
      %p76 = scmp.ne.s32.totalorder %s68, %s71
      %p77 = scmp.eq.s32.totalorder %s23, 0
      %p78 = por %p76, %p77
      %p79 = scmp.ne.s32.totalorder %s68, %s71
      %p80 = scmp.eq.s32.totalorder %s28, 3
      %p81 = por %p79, %p80
      %p82 = scmp.ne.s32.totalorder %s71, %s72
      %p83 = scmp.eq.s32.totalorder %s28, 0
      %p84 = por %p82, %p83
      %p85 = scmp.ne.s32.totalorder %s71, %s72
      %p86 = scmp.eq.s32.totalorder %s29, 3
      %p87 = por %p85, %p86
      %p89 = scmp.ne.s32.totalorder %s72, %s88
      %p90 = scmp.eq.s32.totalorder %s29, 0
      %p91 = por %p89, %p90
      %s92 = ssub.s32 %s30, %s42
      %s93 = ssub.s32 %s31, %s38
      %s94 = sor.u32 %s92, %s93
      %p95 = scmp.eq.s32.totalorder %s94, 0
      %s97 = sadd.s32 %s96, 1
      %s98 = scalar_select %p95, %s96, %s97
      %p101 = pneg %p95
      %p102 = scmp.eq.s32.totalorder %s23, 3
      %p103 = por %p101, %p102
      %p104 = scmp.ne.s32.totalorder %s96, %s99
      %p105 = scmp.eq.s32.totalorder %s23, 0
      %p106 = por %p104, %p105
      %p107 = scmp.ne.s32.totalorder %s96, %s99
      %p108 = scmp.eq.s32.totalorder %s28, 3
      %p109 = por %p107, %p108
      %p110 = scmp.ne.s32.totalorder %s99, %s100
      %p111 = scmp.eq.s32.totalorder %s28, 0
      %p112 = por %p110, %p111
      %p113 = scmp.ne.s32.totalorder %s99, %s100
      %p114 = scmp.eq.s32.totalorder %s29, 3
      %p115 = por %p113, %p114
      %p117 = scmp.ne.s32.totalorder %s100, %s116
      %p118 = scmp.eq.s32.totalorder %s29, 0
      %p119 = por %p117, %p118
      %s121 = sadd.s32 %s120, 1
      %p124 = scmp.eq.s32.totalorder %s23, 3
      %p125 = scmp.ne.s32.totalorder %s120, %s122
      %p126 = scmp.eq.s32.totalorder %s23, 0
      %p127 = por %p125, %p126
      %p128 = scmp.ne.s32.totalorder %s120, %s122
      %p129 = scmp.eq.s32.totalorder %s28, 3
      %p130 = por %p128, %p129
      %p131 = scmp.ne.s32.totalorder %s122, %s123
      %p132 = scmp.eq.s32.totalorder %s28, 0
      %p133 = por %p131, %p132
      %p134 = scmp.ne.s32.totalorder %s122, %s123
      %p135 = scmp.eq.s32.totalorder %s29, 3
      %p136 = por %p134, %p135
      %p138 = scmp.ne.s32.totalorder %s123, %s137
      %p139 = scmp.eq.s32.totalorder %s29, 0
      %p140 = por %p138, %p139
      %s142 = sadd.s32 %s141, 1
      %p145 = scmp.eq.s32.totalorder %s23, 3
      %p146 = scmp.ne.s32.totalorder %s141, %s143
      %p147 = scmp.eq.s32.totalorder %s23, 0
      %p148 = por %p146, %p147
      %p149 = scmp.ne.s32.totalorder %s141, %s143
      %p150 = scmp.eq.s32.totalorder %s28, 3
      %p151 = por %p149, %p150
      %p152 = scmp.ne.s32.totalorder %s143, %s144
      %p153 = scmp.eq.s32.totalorder %s28, 0
      %p154 = por %p152, %p153
      %p155 = scmp.ne.s32.totalorder %s143, %s144
      %p156 = scmp.eq.s32.totalorder %s29, 3
      %p157 = por %p155, %p156
      %p159 = scmp.ne.s32.totalorder %s144, %s158
      %p160 = scmp.eq.s32.totalorder %s29, 0
      %p161 = por %p159, %p160
      %s163 = sadd.s32 %s162, 1
      %p166 = scmp.eq.s32.totalorder %s23, 3
      %p167 = scmp.ne.s32.totalorder %s162, %s164
      %p168 = scmp.eq.s32.totalorder %s23, 0
      %p169 = por %p167, %p168
      %p170 = scmp.ne.s32.totalorder %s162, %s164
      %p171 = scmp.eq.s32.totalorder %s28, 3
      %p172 = por %p170, %p171
      %p173 = scmp.ne.s32.totalorder %s164, %s165
      %p174 = scmp.eq.s32.totalorder %s28, 0
      %p175 = por %p173, %p174
      %p176 = scmp.ne.s32.totalorder %s164, %s165
      %p177 = scmp.eq.s32.totalorder %s29, 3
      %p178 = por %p176, %p177
      %p180 = scmp.ne.s32.totalorder %s165, %s179
      %p181 = scmp.eq.s32.totalorder %s29, 0
      %p182 = por %p180, %p181
      %s184 = sadd.s32 %s183, 1
      %p187 = scmp.eq.s32.totalorder %s23, 3
      %p188 = scmp.ne.s32.totalorder %s183, %s185
      %p189 = scmp.eq.s32.totalorder %s23, 0
      %p190 = por %p188, %p189
      %p191 = scmp.ne.s32.totalorder %s183, %s185
      %p192 = scmp.eq.s32.totalorder %s28, 3
      %p193 = por %p191, %p192
      %p194 = scmp.ne.s32.totalorder %s185, %s186
      %p195 = scmp.eq.s32.totalorder %s28, 0
      %p196 = por %p194, %p195
      %p197 = scmp.ne.s32.totalorder %s185, %s186
      %p198 = scmp.eq.s32.totalorder %s29, 3
      %p199 = por %p197, %p198
      %p201 = scmp.ne.s32.totalorder %s186, %s200
      %p202 = scmp.eq.s32.totalorder %s29, 0
      %p203 = por %p201, %p202
      %s205 = sadd.s32 %s204, 1
      %p208 = scmp.eq.s32.totalorder %s23, 3
      %p209 = scmp.ne.s32.totalorder %s204, %s206
      %p210 = scmp.eq.s32.totalorder %s23, 0
      %p211 = por %p209, %p210
      %p212 = scmp.ne.s32.totalorder %s204, %s206
      %p213 = scmp.eq.s32.totalorder %s28, 3
      %p214 = por %p212, %p213
      %p215 = scmp.ne.s32.totalorder %s206, %s207
      %p216 = scmp.eq.s32.totalorder %s28, 0
      %p217 = por %p215, %p216
      %p218 = scmp.ne.s32.totalorder %s206, %s207
      %p219 = scmp.eq.s32.totalorder %s29, 3
      %p220 = por %p218, %p219
      %p222 = scmp.ne.s32.totalorder %s207, %s221
      %p223 = scmp.eq.s32.totalorder %s29, 0
      %p224 = por %p222, %p223
      %s226 = sadd.s32 %s225, 1
      %p229 = scmp.eq.s32.totalorder %s23, 3
      %p230 = scmp.ne.s32.totalorder %s225, %s227
      %p231 = scmp.eq.s32.totalorder %s23, 0
      %p232 = por %p230, %p231
      %p233 = scmp.ne.s32.totalorder %s225, %s227
      %p234 = scmp.eq.s32.totalorder %s28, 3
      %p235 = por %p233, %p234
      %p236 = scmp.ne.s32.totalorder %s227, %s228
      %p237 = scmp.eq.s32.totalorder %s28, 0
      %p238 = por %p236, %p237
      %p239 = scmp.ne.s32.totalorder %s227, %s228
      %p240 = scmp.eq.s32.totalorder %s29, 3
      %p241 = por %p239, %p240
      %p243 = scmp.ne.s32.totalorder %s228, %s242
      %p244 = scmp.eq.s32.totalorder %s29, 0
      %p245 = por %p243, %p244
      %s247 = sadd.s32 %s246, 1
      %p250 = scmp.eq.s32.totalorder %s23, 3
      %p251 = scmp.ne.s32.totalorder %s246, %s248
      %p252 = scmp.eq.s32.totalorder %s23, 0
      %p253 = por %p251, %p252
      %p254 = scmp.ne.s32.totalorder %s246, %s248
      %p255 = scmp.eq.s32.totalorder %s28, 3
      %p256 = por %p254, %p255
      %p257 = scmp.ne.s32.totalorder %s248, %s249
      %p258 = scmp.eq.s32.totalorder %s28, 0
      %p259 = por %p257, %p258
      %p260 = scmp.ne.s32.totalorder %s248, %s249
      %p261 = scmp.eq.s32.totalorder %s29, 3
      %p262 = por %p260, %p261
      %p264 = scmp.ne.s32.totalorder %s249, %s263
      %p265 = scmp.eq.s32.totalorder %s29, 0
      %p266 = por %p264, %p265
      %s268 = sadd.s32 %s267, 1
      %p271 = scmp.eq.s32.totalorder %s23, 3
      %p272 = scmp.ne.s32.totalorder %s267, %s269
      %p273 = scmp.eq.s32.totalorder %s23, 0
      %p274 = por %p272, %p273
      %p275 = scmp.ne.s32.totalorder %s267, %s269
      %p276 = scmp.eq.s32.totalorder %s28, 3
      %p277 = por %p275, %p276
      %p278 = scmp.ne.s32.totalorder %s269, %s270
      %p279 = scmp.eq.s32.totalorder %s28, 0
      %p280 = por %p278, %p279
      %p281 = scmp.ne.s32.totalorder %s269, %s270
      %p282 = scmp.eq.s32.totalorder %s29, 3
      %p283 = por %p281, %p282
      %p285 = scmp.ne.s32.totalorder %s270, %s284
      %p286 = scmp.eq.s32.totalorder %s29, 0
      %p287 = por %p285, %p286
      %s289 = sadd.s32 %s288, 1
      %p292 = scmp.eq.s32.totalorder %s23, 3
      %p293 = scmp.ne.s32.totalorder %s288, %s290
      %p294 = scmp.eq.s32.totalorder %s23, 0
      %p295 = por %p293, %p294
      %p296 = scmp.ne.s32.totalorder %s288, %s290
      %p297 = scmp.eq.s32.totalorder %s28, 3
      %p298 = por %p296, %p297
      %p299 = scmp.ne.s32.totalorder %s290, %s291
      %p300 = scmp.eq.s32.totalorder %s28, 0
      %p301 = por %p299, %p300
      %p302 = scmp.ne.s32.totalorder %s290, %s291
      %p303 = scmp.eq.s32.totalorder %s29, 3
      %p304 = por %p302, %p303
      %p306 = scmp.ne.s32.totalorder %s291, %s305
      %p307 = scmp.eq.s32.totalorder %s29, 0
      %p308 = por %p306, %p307
      %s310 = sadd.s32 %s309, 1
      %p313 = scmp.eq.s32.totalorder %s23, 3
      %p314 = scmp.ne.s32.totalorder %s309, %s311
      %p315 = scmp.eq.s32.totalorder %s23, 0
      %p316 = por %p314, %p315
      %p317 = scmp.ne.s32.totalorder %s309, %s311
      %p318 = scmp.eq.s32.totalorder %s28, 3
      %p319 = por %p317, %p318
      %p320 = scmp.ne.s32.totalorder %s311, %s312
      %p321 = scmp.eq.s32.totalorder %s28, 0
      %p322 = por %p320, %p321
      %p323 = scmp.ne.s32.totalorder %s311, %s312
      %p324 = scmp.eq.s32.totalorder %s29, 3
      %p325 = por %p323, %p324
      %p327 = scmp.ne.s32.totalorder %s312, %s326
      %p328 = scmp.eq.s32.totalorder %s29, 0
      %p329 = por %p327, %p328
      %s331 = sadd.s32 %s330, 1
      %p334 = scmp.eq.s32.totalorder %s23, 3
      %p335 = scmp.ne.s32.totalorder %s330, %s332
      %p336 = scmp.eq.s32.totalorder %s23, 0
      %p337 = por %p335, %p336
      %p338 = scmp.ne.s32.totalorder %s330, %s332
      %p339 = scmp.eq.s32.totalorder %s28, 3
      %p340 = por %p338, %p339
      %p341 = scmp.ne.s32.totalorder %s332, %s333
      %p342 = scmp.eq.s32.totalorder %s28, 0
      %p343 = por %p341, %p342
      %p344 = scmp.ne.s32.totalorder %s332, %s333
      %p345 = scmp.eq.s32.totalorder %s29, 3
      %p346 = por %p344, %p345
      %p348 = scmp.ne.s32.totalorder %s333, %s347
      %p349 = scmp.eq.s32.totalorder %s29, 0
      %p350 = por %p348, %p349
      %s352 = sadd.s32 %s351, 1
      %p355 = scmp.eq.s32.totalorder %s23, 3
      %p356 = scmp.ne.s32.totalorder %s351, %s353
      %p357 = scmp.eq.s32.totalorder %s23, 0
      %p358 = por %p356, %p357
      %p359 = scmp.ne.s32.totalorder %s351, %s353
      %p360 = scmp.eq.s32.totalorder %s28, 3
      %p361 = por %p359, %p360
      %p362 = scmp.ne.s32.totalorder %s353, %s354
      %p363 = scmp.eq.s32.totalorder %s28, 0
      %p364 = por %p362, %p363
      %p365 = scmp.ne.s32.totalorder %s353, %s354
      %p366 = scmp.eq.s32.totalorder %s29, 3
      %p367 = por %p365, %p366
      %p369 = scmp.ne.s32.totalorder %s354, %s368
      %p370 = scmp.eq.s32.totalorder %s29, 0
      %p371 = por %p369, %p370
      %s373 = sadd.s32 %s372, 1
      %p376 = scmp.eq.s32.totalorder %s23, 3
      %p377 = scmp.ne.s32.totalorder %s372, %s374
      %p378 = scmp.eq.s32.totalorder %s23, 0
      %p379 = por %p377, %p378
      %p380 = scmp.ne.s32.totalorder %s372, %s374
      %p381 = scmp.eq.s32.totalorder %s28, 3
      %p382 = por %p380, %p381
      %p383 = scmp.ne.s32.totalorder %s374, %s375
      %p384 = scmp.eq.s32.totalorder %s28, 0
      %p385 = por %p383, %p384
      %p386 = scmp.ne.s32.totalorder %s374, %s375
      %p387 = scmp.eq.s32.totalorder %s29, 3
      %p388 = por %p386, %p387
      %p390 = scmp.ne.s32.totalorder %s375, %s389
      %p391 = scmp.eq.s32.totalorder %s29, 0
      %p392 = por %p390, %p391
      %p393 = scmp.le.s32.totalorder 1, %s23
      %p394 = scmp.lt.s32.totalorder %s23, 5
      %p395 = pnand %p393, %p394
      %p396 = pneg %p395
      // Predicated region
      $region9: #{pointnet2_classifier.1} parent=5 // pred_check
        _
      $region10: #{pointnet2_classifier.1} parent=5 // pred_check_branch
        %398 = sbr.rel (%p395) target = $region12
      $region11: #{pointnet2_classifier.1} parent=5 // pred_region
        %s399 = ssub.s32 %s23, 1
        // Predicated region
        $region13: #{pointnet2_classifier.1} parent=11 // pred_check
          %p400 = pneg %p56
        $region14: #{pointnet2_classifier.1} parent=11 // pred_check_branch
          %402 = sbr.rel (%p400) target = $region16
        $region15: #{pointnet2_classifier.1} parent=11 // pred_region
          _
        $region16: #{pointnet2_classifier.1} parent=11 // pred_fallthru
          _
        // Predicated region
        $region17: #{pointnet2_classifier.1} parent=11 // pred_check
          %p403 = pneg %p133
        $region18: #{pointnet2_classifier.1} parent=11 // pred_check_branch
          %405 = sbr.rel (%p403) target = $region20
        $region19: #{pointnet2_classifier.1} parent=11 // pred_region
          _
        $region20: #{pointnet2_classifier.1} parent=11 // pred_fallthru
          _
        // Predicated region
        $region21: #{pointnet2_classifier.1} parent=11 // pred_check
          %p406 = pneg %p154
        $region22: #{pointnet2_classifier.1} parent=11 // pred_check_branch
          %408 = sbr.rel (%p406) target = $region24
        $region23: #{pointnet2_classifier.1} parent=11 // pred_region
          _
        $region24: #{pointnet2_classifier.1} parent=11 // pred_fallthru
          _
        // Predicated region
        $region25: #{pointnet2_classifier.1} parent=11 // pred_check
          %p409 = pneg %p175
        $region26: #{pointnet2_classifier.1} parent=11 // pred_check_branch
          %411 = sbr.rel (%p409) target = $region28
        $region27: #{pointnet2_classifier.1} parent=11 // pred_region
          _
        $region28: #{pointnet2_classifier.1} parent=11 // pred_fallthru
          _
        // Predicated region
        $region29: #{pointnet2_classifier.1} parent=11 // pred_check
          %p412 = pneg %p196
        $region30: #{pointnet2_classifier.1} parent=11 // pred_check_branch
          %414 = sbr.rel (%p412) target = $region32
        $region31: #{pointnet2_classifier.1} parent=11 // pred_region
          _
        $region32: #{pointnet2_classifier.1} parent=11 // pred_fallthru
          _
        // Predicated region
        $region33: #{pointnet2_classifier.1} parent=11 // pred_check
          %p415 = pneg %p217
        $region34: #{pointnet2_classifier.1} parent=11 // pred_check_branch
          %417 = sbr.rel (%p415) target = $region36
        $region35: #{pointnet2_classifier.1} parent=11 // pred_region
          _
        $region36: #{pointnet2_classifier.1} parent=11 // pred_fallthru
          _
        // Predicated region
        $region37: #{pointnet2_classifier.1} parent=11 // pred_check
          %p418 = pneg %p238
        $region38: #{pointnet2_classifier.1} parent=11 // pred_check_branch
          %420 = sbr.rel (%p418) target = $region40
        $region39: #{pointnet2_classifier.1} parent=11 // pred_region
          _
        $region40: #{pointnet2_classifier.1} parent=11 // pred_fallthru
          _
        // Predicated region
        $region41: #{pointnet2_classifier.1} parent=11 // pred_check
          %p421 = pneg %p259
        $region42: #{pointnet2_classifier.1} parent=11 // pred_check_branch
          %423 = sbr.rel (%p421) target = $region44
        $region43: #{pointnet2_classifier.1} parent=11 // pred_region
          _
        $region44: #{pointnet2_classifier.1} parent=11 // pred_fallthru
          _
        // Predicated region
        $region45: #{pointnet2_classifier.1} parent=11 // pred_check
          %p424 = pneg %p280
        $region46: #{pointnet2_classifier.1} parent=11 // pred_check_branch
          %426 = sbr.rel (%p424) target = $region48
        $region47: #{pointnet2_classifier.1} parent=11 // pred_region
          _
        $region48: #{pointnet2_classifier.1} parent=11 // pred_fallthru
          _
        // Predicated region
        $region49: #{pointnet2_classifier.1} parent=11 // pred_check
          %p427 = pneg %p301
        $region50: #{pointnet2_classifier.1} parent=11 // pred_check_branch
          %429 = sbr.rel (%p427) target = $region52
        $region51: #{pointnet2_classifier.1} parent=11 // pred_region
          _
        $region52: #{pointnet2_classifier.1} parent=11 // pred_fallthru
          _
        // Predicated region
        $region53: #{pointnet2_classifier.1} parent=11 // pred_check
          %p430 = pneg %p322
        $region54: #{pointnet2_classifier.1} parent=11 // pred_check_branch
          %432 = sbr.rel (%p430) target = $region56
        $region55: #{pointnet2_classifier.1} parent=11 // pred_region
          _
        $region56: #{pointnet2_classifier.1} parent=11 // pred_fallthru
          _
        // Predicated region
        $region57: #{pointnet2_classifier.1} parent=11 // pred_check
          %p433 = pneg %p343
        $region58: #{pointnet2_classifier.1} parent=11 // pred_check_branch
          %435 = sbr.rel (%p433) target = $region60
        $region59: #{pointnet2_classifier.1} parent=11 // pred_region
          _
        $region60: #{pointnet2_classifier.1} parent=11 // pred_fallthru
          _
      $region12: #{pointnet2_classifier.1} parent=5 // pred_fallthru
        _
      %p436 = scmp.lt.s32.totalorder %s23, 4
      // Predicated region
      $region61: #{pointnet2_classifier.1} parent=5 // pred_check
        %p437 = pneg %p436
      $region62: #{pointnet2_classifier.1} parent=5 // pred_check_branch
        %439 = sbr.rel (%p437) target = $region64
      $region63: #{pointnet2_classifier.1} parent=5 // pred_region
        // Predicated region
        $region65: #{pointnet2_classifier.1} parent=63 // pred_check
          %p440 = pneg %p78
        $region66: #{pointnet2_classifier.1} parent=63 // pred_check_branch
          %442 = sbr.rel (%p440) target = $region68
        $region67: #{pointnet2_classifier.1} parent=63 // pred_region
          %p443 = scmp.lt.s32.totalorder %s30, 1
          %s444 = scalar_select %p443, %s30, 1
          %p445 = scmp.lt.s32.totalorder %s31, 1
          %s446 = scalar_select %p445, %s31, 1
          %s447 = smul.addr %s444, 2
          %s448 = sadd.s32 %s446, %s447
          %s449 = smul.addr %s448, 4
          %s450 = scalar_lea.vmem %s1, %s449
        $region68: #{pointnet2_classifier.1} parent=63 // pred_fallthru
          _
        // Predicated region
        $region69: #{pointnet2_classifier.1} parent=63 // pred_check
          %p451 = pneg %p106
        $region70: #{pointnet2_classifier.1} parent=63 // pred_check_branch
          %453 = sbr.rel (%p451) target = $region72
        $region71: #{pointnet2_classifier.1} parent=63 // pred_region
          %p454 = scmp.lt.s32.totalorder %s30, 1
          %s455 = scalar_select %p454, %s30, 1
          %p456 = scmp.lt.s32.totalorder %s31, 1
          %s457 = scalar_select %p456, %s31, 1
          %s458 = smul.addr %s455, 2
          %s459 = sadd.s32 %s457, %s458
          %s460 = smul.addr %s459, 4
          %s461 = scalar_lea.vmem %s2, %s460
        $region72: #{pointnet2_classifier.1} parent=63 // pred_fallthru
          _
      $region64: #{pointnet2_classifier.1} parent=5 // pred_fallthru
        _
      %p462 = scmp.le.s32.totalorder 1, %s23
      %p463 = scmp.lt.s32.totalorder %s23, 5
      %p464 = pnand %p462, %p463
      %p465 = pneg %p464
      // Predicated region
      $region73: #{pointnet2_classifier.1} parent=5 // pred_check
        _
      $region74: #{pointnet2_classifier.1} parent=5 // pred_check_branch
        %467 = sbr.rel (%p464) target = $region76
      $region75: #{pointnet2_classifier.1} parent=5 // pred_region
        %s468 = ssub.s32 %s23, 1
        %p469 = pneg %p56
        %p470 = pneg %p53
        %p471 = scmp.lt.s32.totalorder %s32, 1
        %s472 = scalar_select %p471, %s32, 1
        %p473 = scmp.lt.s32.totalorder %s33, 1
        %s474 = scalar_select %p473, %s33, 1
        %s475 = smul.addr %s472, 2
        %s476 = sadd.s32 %s474, %s475
        %s477 = smul.addr %s476, 4
        %s478 = scalar_lea.vmem %s1, %s477
        %p479 = pneg %p84
        %p480 = pneg %p81
        %p481 = scmp.lt.s32.totalorder %s32, 1
        %s482 = scalar_select %p481, %s32, 1
        %p483 = scmp.lt.s32.totalorder %s33, 1
        %s484 = scalar_select %p483, %s33, 1
        %s485 = smul.addr %s482, 2
        %s486 = sadd.s32 %s484, %s485
        %s487 = smul.addr %s486, 4
        %s488 = scalar_lea.vmem %s2, %s487
        %p489 = pneg %p112
        %p490 = pneg %p109
        %p491 = pneg %p133
        %p492 = pneg %p130
        %p493 = pneg %p154
        %p494 = pneg %p151
        %p495 = pneg %p175
        %p496 = pneg %p172
        %p497 = pneg %p196
        %p498 = pneg %p193
        %p499 = pneg %p217
        %p500 = pneg %p214
        %p501 = pneg %p238
        %p502 = pneg %p235
        %p503 = pneg %p259
        %p504 = pneg %p256
        %p505 = pneg %p280
        %p506 = pneg %p277
        %p507 = pneg %p301
        %p508 = pneg %p298
        %p509 = pneg %p322
        %p510 = pneg %p319
        %p511 = pneg %p343
        %p512 = pneg %p340
        %p513 = pneg %p364
        %p514 = pneg %p361
        %p515 = pneg %p385
        %p516 = pneg %p382
        %p517 = scmp.lt.s32.totalorder %s32, 1
        %s518 = scalar_select %p517, %s32, 1
        %p519 = scmp.lt.s32.totalorder %s33, 1
        %s520 = scalar_select %p519, %s33, 1
        %s521 = smul.addr %s518, 2
        %s522 = sadd.s32 %s520, %s521
        %s523 = smul.addr %s522, 4
        %s524 = scalar_lea.vmem %s1, %s523
        %p525 = scmp.lt.s32.totalorder %s32, 1
        %s526 = scalar_select %p525, %s32, 1
        %p527 = scmp.lt.s32.totalorder %s33, 1
        %s528 = scalar_select %p527, %s33, 1
        %s529 = smul.addr %s526, 2
        %s530 = sadd.s32 %s528, %s529
        %s531 = smul.addr %s530, 4
        %s532 = scalar_lea.vmem %s2, %s531
        %p533 = scmp.eq.s32.totalorder %s32, 0
        %p534 = scmp.eq.s32.totalorder %s33, 0
        %p535 = pnand %p533, %p534
        %p536 = pneg %p535
        // Predicated region
        $region77: #{pointnet2_classifier.1} parent=75 // pred_check
          _
        $region78: #{pointnet2_classifier.1} parent=75 // pred_check_branch
          %538 = sbr.rel (%p535) target = $region80
        $region79: #{pointnet2_classifier.1} parent=75 // pred_region
          %vm539 = vcmask 15360
          %540 = vst.msk [vmem:[#allocation2] sm:$0xff] %vm539, -inf
          %541 = vst.msk [vmem:[#allocation2 + $0x8] sm:$0xff] %vm539, -inf
          %542 = vst.msk [vmem:[#allocation2 + $0x10] sm:$0xff] %vm539, -inf
          %543 = vst.msk [vmem:[#allocation2 + $0x18] sm:$0xff] %vm539, -inf
        $region80: #{pointnet2_classifier.1} parent=75 // pred_fallthru
          _
        %v544 = vld [vmem:[%s3] sm:$0xff]
        %v545 = vld [vmem:[%s3 + $0x8] sm:$0xff]
        %v546 = vld [vmem:[%s524] sm:$0x7]
        %v547 = vld [vmem:[%s4] sm:$0xff]
        %v548 = vld [vmem:[%s4 + $0x8] sm:$0xff]
        %v549 = vld [vmem:[%s532] sm:$0x7]
        %vm550 = vcmask 23552
        %v552 = vsel %vm550, %v547, 0
        %v555 = vsel %vm550, %v548, 0
        %vm557 = vcmask 1042432
        %v559 = vsel %vm557, %v549, 0
        %561 = vmatprep.subr.mxu0 0.0
        %562 = vmatpush1.msra.mxu0 0.0
        %563 = vmatprep.subr.mxu0 0.0
        %564 = vmatpush1.msra.mxu0 0.0
        %565 = vmatprep.subr.mxu0 0.0
        %566 = vmatpush1.msra.mxu0 0.0
        %567 = vmatprep.subr.mxu0 0.0
        %568 = vmatpush1.msra.mxu0 0.0
        %569 = vmatprep.subr.mxu0 0.0
        %570 = vmatpush1.msra.mxu0 0.0
        %571 = vmatprep.subr.mxu0 0.0
        %572 = vmatpush1.msra.mxu0 0.0
        %573 = vmatprep.subr.mxu0 0.0
        %574 = vmatpush1.msra.mxu0 0.0
        %575 = vmatprep.subr.mxu0 0.0
        %576 = vmatpush1.msra.mxu0 0.0
        %577 = vmatprep.subr.mxu0 0.0
        %578 = vmatpush1.msra.mxu0 0.0
        %579 = vmatprep.subr.mxu0 0.0
        %580 = vmatpush1.msra.mxu0 0.0
        %581 = vmatprep.subr.mxu0 0.0
        %582 = vmatpush1.msra.mxu0 0.0
        %583 = vmatprep.subr.mxu0 0.0
        %584 = vmatpush1.msra.mxu0 0.0
        %585 = vmatprep.subr.mxu0 0.0
        %586 = vmatpush1.msra.mxu0 0.0
        %587 = vmatprep.subr.mxu0 0.0
        %588 = vmatpush1.msra.mxu0 0.0
        %589 = vmatprep.subr.mxu0 0.0
        %590 = vmatpush1.msra.mxu0 0.0
        %591 = vmatprep.subr.mxu0 0.0
        %592 = vmatpush1.msra.mxu0 %v559
        %593 = vmatprep.subr.mxu0 0.0
        %594 = vmatpush2.msra.mxu0 0.0
        %595 = vmatprep.subr.mxu0 0.0
        %596 = vmatpush2.msra.mxu0 0.0
        %597 = vmatprep.subr.mxu0 0.0
        %598 = vmatpush2.msra.mxu0 0.0
        %599 = vmatprep.subr.mxu0 0.0
        %600 = vmatpush2.msra.mxu0 0.0
        %601 = vmatprep.subr.mxu0 0.0
        %602 = vmatpush2.msra.mxu0 0.0
        %603 = vmatprep.subr.mxu0 0.0
        %604 = vmatpush2.msra.mxu0 0.0
        %605 = vmatprep.subr.mxu0 0.0
        %606 = vmatpush2.msra.mxu0 0.0
        %607 = vmatprep.subr.mxu0 0.0
        %608 = vmatpush2.msra.mxu0 0.0
        %609 = vmatprep.subr.mxu0 0.0
        %610 = vmatpush2.msra.mxu0 0.0
        %611 = vmatprep.subr.mxu0 0.0
        %612 = vmatpush2.msra.mxu0 0.0
        %613 = vmatprep.subr.mxu0 0.0
        %614 = vmatpush2.msra.mxu0 0.0
        %615 = vmatprep.subr.mxu0 0.0
        %616 = vmatpush2.msra.mxu0 0.0
        %617 = vmatprep.subr.mxu0 0.0
        %618 = vmatpush2.msra.mxu0 0.0
        %619 = vmatprep.subr.mxu0 0.0
        %620 = vmatpush2.msra.mxu0 0.0
        %621 = vmatprep.subr.mxu0 0.0
        %622 = vmatpush2.msra.mxu0 0.0
        %623 = vmatprep.subr.mxu0 0.0
        %624 = vmatpush2.msra.mxu0 0.0
        %625 = vmatprep.mubr.f32.mxu0 0.0
        %626 = vmatmul.mubr.f32.gmra.mxu0 %v552
        %v627 = vpop.f32.mrf.mxu0
        %v628 = vadd.f32 0.0, %v627
        %v629 = vpop.f32.mrf.mxu0
        %630 = vmatprep.mubr.f32.mxu0 0.0
        %631 = vmatmul.mubr.f32.gmra.mxu0 %v555
        %v632 = vpop.f32.mrf.mxu0
        %v633 = vadd.f32 0.0, %v632
        %v634 = vpop.f32.mrf.mxu0
        %635 = vdwg.mxu0
        %v637 = vsel %vm550, %v544, 0
        %v640 = vsel %vm550, %v545, 0
        %v643 = vsel %vm557, %v546, 0
        %645 = vmatprep.subr.mxu0 0.0
        %646 = vmatpush1.msra.mxu0 0.0
        %647 = vmatprep.subr.mxu0 0.0
        %648 = vmatpush1.msra.mxu0 0.0
        %649 = vmatprep.subr.mxu0 0.0
        %650 = vmatpush1.msra.mxu0 0.0
        %651 = vmatprep.subr.mxu0 0.0
        %652 = vmatpush1.msra.mxu0 0.0
        %653 = vmatprep.subr.mxu0 0.0
        %654 = vmatpush1.msra.mxu0 0.0
        %655 = vmatprep.subr.mxu0 0.0
        %656 = vmatpush1.msra.mxu0 0.0
        %657 = vmatprep.subr.mxu0 0.0
        %658 = vmatpush1.msra.mxu0 0.0
        %659 = vmatprep.subr.mxu0 0.0
        %660 = vmatpush1.msra.mxu0 0.0
        %661 = vmatprep.subr.mxu0 0.0
        %662 = vmatpush1.msra.mxu0 0.0
        %663 = vmatprep.subr.mxu0 0.0
        %664 = vmatpush1.msra.mxu0 0.0
        %665 = vmatprep.subr.mxu0 0.0
        %666 = vmatpush1.msra.mxu0 0.0
        %667 = vmatprep.subr.mxu0 0.0
        %668 = vmatpush1.msra.mxu0 0.0
        %669 = vmatprep.subr.mxu0 0.0
        %670 = vmatpush1.msra.mxu0 0.0
        %671 = vmatprep.subr.mxu0 0.0
        %672 = vmatpush1.msra.mxu0 0.0
        %673 = vmatprep.subr.mxu0 0.0
        %674 = vmatpush1.msra.mxu0 0.0
        %675 = vmatprep.subr.mxu0 0.0
        %676 = vmatpush1.msra.mxu0 %v643
        %677 = vmatprep.subr.mxu0 0.0
        %678 = vmatpush2.msra.mxu0 0.0
        %679 = vmatprep.subr.mxu0 0.0
        %680 = vmatpush2.msra.mxu0 0.0
        %681 = vmatprep.subr.mxu0 0.0
        %682 = vmatpush2.msra.mxu0 0.0
        %683 = vmatprep.subr.mxu0 0.0
        %684 = vmatpush2.msra.mxu0 0.0
        %685 = vmatprep.subr.mxu0 0.0
        %686 = vmatpush2.msra.mxu0 0.0
        %687 = vmatprep.subr.mxu0 0.0
        %688 = vmatpush2.msra.mxu0 0.0
        %689 = vmatprep.subr.mxu0 0.0
        %690 = vmatpush2.msra.mxu0 0.0
        %691 = vmatprep.subr.mxu0 0.0
        %692 = vmatpush2.msra.mxu0 0.0
        %693 = vmatprep.subr.mxu0 0.0
        %694 = vmatpush2.msra.mxu0 0.0
        %695 = vmatprep.subr.mxu0 0.0
        %696 = vmatpush2.msra.mxu0 0.0
        %697 = vmatprep.subr.mxu0 0.0
        %698 = vmatpush2.msra.mxu0 0.0
        %699 = vmatprep.subr.mxu0 0.0
        %700 = vmatpush2.msra.mxu0 0.0
        %701 = vmatprep.subr.mxu0 0.0
        %702 = vmatpush2.msra.mxu0 0.0
        %703 = vmatprep.subr.mxu0 0.0
        %704 = vmatpush2.msra.mxu0 0.0
        %705 = vmatprep.subr.mxu0 0.0
        %706 = vmatpush2.msra.mxu0 0.0
        %707 = vmatprep.subr.mxu0 0.0
        %708 = vmatpush2.msra.mxu0 0.0
        %709 = vmatprep.mubr.f32.mxu0 0.0
        %710 = vmatmul.mubr.f32.gmra.mxu0 %v637
        %v711 = vpop.f32.mrf.mxu0
        %v712 = vadd.f32 %v628, %v711
        %v713 = vpop.f32.mrf.mxu0
        %714 = vmatprep.mubr.f32.mxu0 0.0
        %715 = vmatmul.mubr.f32.gmra.mxu0 %v640
        %v716 = vpop.f32.mrf.mxu0
        %v717 = vadd.f32 %v633, %v716
        %v718 = vpop.f32.mrf.mxu0
        %719 = vdwg.mxu0
        %v720 = vld [vmem:[%s5] sm:$0xff]
        %v721 = vld [vmem:[%s5 + $0x8] sm:$0xff]
        %723 = vset.pattern.permute.xlu0 0
        %724 = vperm.xlu0 %723, %v720
        %v725 = vpop.permute.xlu0 %724
        %728 = vset.pattern.permute.xlu0 0
        %729 = vperm.xlu0 %728, %v721
        %v730 = vpop.permute.xlu0 %729
        %v732 = vadd.f32 %v712, %v725
        %v733 = vadd.f32 %v717, %v730
        %v734 = vmax.f32 %v732, 0.0
        %v735 = vmax.f32 %v733, 0.0
        %v736 = vld [vmem:[%s6] sm:$0xff]
        %v737 = vld [vmem:[%s6 + $0x8] sm:$0xff]
        %v738 = vld [vmem:[%s6 + $0x10] sm:$0xff]
        %v739 = vld [vmem:[%s6 + $0x18] sm:$0xff]
        %v740 = vld [vmem:[%s7] sm:$0xff]
        %v741 = vld [vmem:[%s7 + $0x8] sm:$0xff]
        %v742 = vld [vmem:[%s7 + $0x10] sm:$0xff]
        %v743 = vld [vmem:[%s7 + $0x18] sm:$0xff]
        %745 = vset.pattern.permute.xlu0 0
        %746 = vperm.xlu0 %745, %v740
        %v747 = vpop.permute.xlu0 %746
        %750 = vset.pattern.permute.xlu0 0
        %751 = vperm.xlu0 %750, %v741
        %v752 = vpop.permute.xlu0 %751
        %755 = vset.pattern.permute.xlu0 0
        %756 = vperm.xlu0 %755, %v742
        %v757 = vpop.permute.xlu0 %756
        %760 = vset.pattern.permute.xlu0 0
        %761 = vperm.xlu0 %760, %v743
        %v762 = vpop.permute.xlu0 %761
        %vm764 = vcmask 130048
        %v766 = vsel %vm764, %v736, 0
        %v769 = vsel %vm764, %v737, 0
        %v772 = vsel %vm764, %v738, 0
        %v775 = vsel %vm764, %v739, 0
        %777 = vmatprep.subr.mxu0 0.0
        %778 = vmatpush1.msra.mxu0 0.0
        %779 = vmatprep.subr.mxu0 0.0
        %780 = vmatpush1.msra.mxu0 0.0
        %781 = vmatprep.subr.mxu0 0.0
        %782 = vmatpush1.msra.mxu0 0.0
        %783 = vmatprep.subr.mxu0 0.0
        %784 = vmatpush1.msra.mxu0 0.0
        %785 = vmatprep.subr.mxu0 0.0
        %786 = vmatpush1.msra.mxu0 0.0
        %787 = vmatprep.subr.mxu0 0.0
        %788 = vmatpush1.msra.mxu0 0.0
        %789 = vmatprep.subr.mxu0 0.0
        %790 = vmatpush1.msra.mxu0 0.0
        %791 = vmatprep.subr.mxu0 0.0
        %792 = vmatpush1.msra.mxu0 0.0
        %793 = vmatprep.subr.mxu0 0.0
        %794 = vmatpush1.msra.mxu0 0.0
        %795 = vmatprep.subr.mxu0 0.0
        %796 = vmatpush1.msra.mxu0 0.0
        %797 = vmatprep.subr.mxu0 0.0
        %798 = vmatpush1.msra.mxu0 0.0
        %799 = vmatprep.subr.mxu0 0.0
        %800 = vmatpush1.msra.mxu0 0.0
        %801 = vmatprep.subr.mxu0 0.0
        %802 = vmatpush1.msra.mxu0 0.0
        %803 = vmatprep.subr.mxu0 0.0
        %804 = vmatpush1.msra.mxu0 0.0
        %805 = vmatprep.subr.mxu0 0.0
        %806 = vmatpush1.msra.mxu0 %v735
        %807 = vmatprep.subr.mxu0 0.0
        %808 = vmatpush1.msra.mxu0 %v734
        %809 = vmatprep.subr.mxu0 0.0
        %810 = vmatpush2.msra.mxu0 0.0
        %811 = vmatprep.subr.mxu0 0.0
        %812 = vmatpush2.msra.mxu0 0.0
        %813 = vmatprep.subr.mxu0 0.0
        %814 = vmatpush2.msra.mxu0 0.0
        %815 = vmatprep.subr.mxu0 0.0
        %816 = vmatpush2.msra.mxu0 0.0
        %817 = vmatprep.subr.mxu0 0.0
        %818 = vmatpush2.msra.mxu0 0.0
        %819 = vmatprep.subr.mxu0 0.0
        %820 = vmatpush2.msra.mxu0 0.0
        %821 = vmatprep.subr.mxu0 0.0
        %822 = vmatpush2.msra.mxu0 0.0
        %823 = vmatprep.subr.mxu0 0.0
        %824 = vmatpush2.msra.mxu0 0.0
        %825 = vmatprep.subr.mxu0 0.0
        %826 = vmatpush2.msra.mxu0 0.0
        %827 = vmatprep.subr.mxu0 0.0
        %828 = vmatpush2.msra.mxu0 0.0
        %829 = vmatprep.subr.mxu0 0.0
        %830 = vmatpush2.msra.mxu0 0.0
        %831 = vmatprep.subr.mxu0 0.0
        %832 = vmatpush2.msra.mxu0 0.0
        %833 = vmatprep.subr.mxu0 0.0
        %834 = vmatpush2.msra.mxu0 0.0
        %835 = vmatprep.subr.mxu0 0.0
        %836 = vmatpush2.msra.mxu0 0.0
        %837 = vmatprep.subr.mxu0 0.0
        %838 = vmatpush2.msra.mxu0 0.0
        %839 = vmatprep.subr.mxu0 0.0
        %840 = vmatpush2.msra.mxu0 0.0
        %841 = vmatprep.mubr.f32.mxu0 0.0
        %842 = vmatmul.mubr.f32.gmra.mxu0 %v766
        %v843 = vpop.f32.mrf.mxu0
        %v844 = vadd.f32 %v747, %v843
        %v845 = vpop.f32.mrf.mxu0
        %846 = vmatprep.mubr.f32.mxu0 0.0
        %847 = vmatmul.mubr.f32.gmra.mxu0 %v769
        %v848 = vpop.f32.mrf.mxu0
        %v849 = vadd.f32 %v752, %v848
        %v850 = vpop.f32.mrf.mxu0
        %851 = vmatprep.mubr.f32.mxu0 0.0
        %852 = vmatmul.mubr.f32.gmra.mxu0 %v772
        %v853 = vpop.f32.mrf.mxu0
        %v854 = vadd.f32 %v757, %v853
        %v855 = vpop.f32.mrf.mxu0
        %856 = vmatprep.mubr.f32.mxu0 0.0
        %857 = vmatmul.mubr.f32.gmra.mxu0 %v775
        %v858 = vpop.f32.mrf.mxu0
        %v859 = vadd.f32 %v762, %v858
        %v860 = vpop.f32.mrf.mxu0
        %861 = vdwg.mxu0
        %v862 = vmax.f32 %v844, 0.0
        %v863 = vmax.f32 %v849, 0.0
        %v864 = vmax.f32 %v854, 0.0
        %v865 = vmax.f32 %v859, 0.0
        %v866 = vld [vmem:[%s8] sm:$0xff]
        %v867 = vld [vmem:[%s8 + $0x8] sm:$0xff]
        %v868 = vld [vmem:[%s8 + $0x10] sm:$0xff]
        %v869 = vld [vmem:[%s8 + $0x18] sm:$0xff]
        %v870 = vld [vmem:[%s9] sm:$0xff]
        %v871 = vld [vmem:[%s9 + $0x8] sm:$0xff]
        %v872 = vld [vmem:[%s9 + $0x10] sm:$0xff]
        %v873 = vld [vmem:[%s9 + $0x18] sm:$0xff]
        %875 = vset.pattern.permute.xlu0 0
        %876 = vperm.xlu0 %875, %v870
        %v877 = vpop.permute.xlu0 %876
        %880 = vset.pattern.permute.xlu0 0
        %881 = vperm.xlu0 %880, %v871
        %v882 = vpop.permute.xlu0 %881
        %885 = vset.pattern.permute.xlu0 0
        %886 = vperm.xlu0 %885, %v872
        %v887 = vpop.permute.xlu0 %886
        %890 = vset.pattern.permute.xlu0 0
        %891 = vperm.xlu0 %890, %v873
        %v892 = vpop.permute.xlu0 %891
        %vm894 = vcmask 261120
        %v896 = vsel %vm894, %v866, 0
        %v899 = vsel %vm894, %v867, 0
        %v902 = vsel %vm894, %v868, 0
        %v905 = vsel %vm894, %v869, 0
        %907 = vmatprep.subr.mxu0 0.0
        %908 = vmatpush1.msra.mxu0 0.0
        %909 = vmatprep.subr.mxu0 0.0
        %910 = vmatpush1.msra.mxu0 0.0
        %911 = vmatprep.subr.mxu0 0.0
        %912 = vmatpush1.msra.mxu0 0.0
        %913 = vmatprep.subr.mxu0 0.0
        %914 = vmatpush1.msra.mxu0 0.0
        %915 = vmatprep.subr.mxu0 0.0
        %916 = vmatpush1.msra.mxu0 0.0
        %917 = vmatprep.subr.mxu0 0.0
        %918 = vmatpush1.msra.mxu0 0.0
        %919 = vmatprep.subr.mxu0 0.0
        %920 = vmatpush1.msra.mxu0 0.0
        %921 = vmatprep.subr.mxu0 0.0
        %922 = vmatpush1.msra.mxu0 0.0
        %923 = vmatprep.subr.mxu0 0.0
        %924 = vmatpush1.msra.mxu0 0.0
        %925 = vmatprep.subr.mxu0 0.0
        %926 = vmatpush1.msra.mxu0 0.0
        %927 = vmatprep.subr.mxu0 0.0
        %928 = vmatpush1.msra.mxu0 0.0
        %929 = vmatprep.subr.mxu0 0.0
        %930 = vmatpush1.msra.mxu0 0.0
        %931 = vmatprep.subr.mxu0 0.0
        %932 = vmatpush1.msra.mxu0 %v865
        %933 = vmatprep.subr.mxu0 0.0
        %934 = vmatpush1.msra.mxu0 %v864
        %935 = vmatprep.subr.mxu0 0.0
        %936 = vmatpush1.msra.mxu0 %v863
        %937 = vmatprep.subr.mxu0 0.0
        %938 = vmatpush1.msra.mxu0 %v862
        %939 = vmatprep.subr.mxu0 0.0
        %940 = vmatpush2.msra.mxu0 0.0
        %941 = vmatprep.subr.mxu0 0.0
        %942 = vmatpush2.msra.mxu0 0.0
        %943 = vmatprep.subr.mxu0 0.0
        %944 = vmatpush2.msra.mxu0 0.0
        %945 = vmatprep.subr.mxu0 0.0
        %946 = vmatpush2.msra.mxu0 0.0
        %947 = vmatprep.subr.mxu0 0.0
        %948 = vmatpush2.msra.mxu0 0.0
        %949 = vmatprep.subr.mxu0 0.0
        %950 = vmatpush2.msra.mxu0 0.0
        %951 = vmatprep.subr.mxu0 0.0
        %952 = vmatpush2.msra.mxu0 0.0
        %953 = vmatprep.subr.mxu0 0.0
        %954 = vmatpush2.msra.mxu0 0.0
        %955 = vmatprep.subr.mxu0 0.0
        %956 = vmatpush2.msra.mxu0 0.0
        %957 = vmatprep.subr.mxu0 0.0
        %958 = vmatpush2.msra.mxu0 0.0
        %959 = vmatprep.subr.mxu0 0.0
        %960 = vmatpush2.msra.mxu0 0.0
        %961 = vmatprep.subr.mxu0 0.0
        %962 = vmatpush2.msra.mxu0 0.0
        %963 = vmatprep.subr.mxu0 0.0
        %964 = vmatpush2.msra.mxu0 0.0
        %965 = vmatprep.subr.mxu0 0.0
        %966 = vmatpush2.msra.mxu0 0.0
        %967 = vmatprep.subr.mxu0 0.0
        %968 = vmatpush2.msra.mxu0 0.0
        %969 = vmatprep.subr.mxu0 0.0
        %970 = vmatpush2.msra.mxu0 0.0
        %971 = vmatprep.mubr.f32.mxu0 0.0
        %972 = vmatmul.mubr.f32.gmra.mxu0 %v896
        %v973 = vpop.f32.mrf.mxu0
        %v974 = vadd.f32 %v877, %v973
        %v975 = vpop.f32.mrf.mxu0
        %976 = vmatprep.mubr.f32.mxu0 0.0
        %977 = vmatmul.mubr.f32.gmra.mxu0 %v899
        %v978 = vpop.f32.mrf.mxu0
        %v979 = vadd.f32 %v882, %v978
        %v980 = vpop.f32.mrf.mxu0
        %981 = vmatprep.mubr.f32.mxu0 0.0
        %982 = vmatmul.mubr.f32.gmra.mxu0 %v902
        %v983 = vpop.f32.mrf.mxu0
        %v984 = vadd.f32 %v887, %v983
        %v985 = vpop.f32.mrf.mxu0
        %986 = vmatprep.mubr.f32.mxu0 0.0
        %987 = vmatmul.mubr.f32.gmra.mxu0 %v905
        %v988 = vpop.f32.mrf.mxu0
        %v989 = vadd.f32 %v892, %v988
        %v990 = vpop.f32.mrf.mxu0
        %991 = vdwg.mxu0
        %v992 = vmax.f32 %v974, 0.0
        %v993 = vmax.f32 %v979, 0.0
        %v994 = vmax.f32 %v984, 0.0
        %v995 = vmax.f32 %v989, 0.0
        %v996 = vld [vmem:[%s10] sm:$0xff]
        %v997 = vld [vmem:[%s10 + $0x8] sm:$0xff]
        %v998 = vld [vmem:[%s10 + $0x10] sm:$0xff]
        %v999 = vld [vmem:[%s10 + $0x18] sm:$0xff]
        %v1000 = vld [vmem:[%s11] sm:$0xff]
        %v1001 = vld [vmem:[%s11 + $0x8] sm:$0xff]
        %v1002 = vld [vmem:[%s11 + $0x10] sm:$0xff]
        %v1003 = vld [vmem:[%s11 + $0x18] sm:$0xff]
        %1005 = vset.pattern.permute.xlu0 0
        %1006 = vperm.xlu0 %1005, %v1000
        %v1007 = vpop.permute.xlu0 %1006
        %1010 = vset.pattern.permute.xlu0 0
        %1011 = vperm.xlu0 %1010, %v1001
        %v1012 = vpop.permute.xlu0 %1011
        %1015 = vset.pattern.permute.xlu0 0
        %1016 = vperm.xlu0 %1015, %v1002
        %v1017 = vpop.permute.xlu0 %1016
        %1020 = vset.pattern.permute.xlu0 0
        %1021 = vperm.xlu0 %1020, %v1003
        %v1022 = vpop.permute.xlu0 %1021
        %v1025 = vsel %vm894, %v996, 0
        %v1028 = vsel %vm894, %v997, 0
        %v1031 = vsel %vm894, %v998, 0
        %v1034 = vsel %vm894, %v999, 0
        %1036 = vmatprep.subr.mxu0 0.0
        %1037 = vmatpush1.msra.mxu0 0.0
        %1038 = vmatprep.subr.mxu0 0.0
        %1039 = vmatpush1.msra.mxu0 0.0
        %1040 = vmatprep.subr.mxu0 0.0
        %1041 = vmatpush1.msra.mxu0 0.0
        %1042 = vmatprep.subr.mxu0 0.0
        %1043 = vmatpush1.msra.mxu0 0.0
        %1044 = vmatprep.subr.mxu0 0.0
        %1045 = vmatpush1.msra.mxu0 0.0
        %1046 = vmatprep.subr.mxu0 0.0
        %1047 = vmatpush1.msra.mxu0 0.0
        %1048 = vmatprep.subr.mxu0 0.0
        %1049 = vmatpush1.msra.mxu0 0.0
        %1050 = vmatprep.subr.mxu0 0.0
        %1051 = vmatpush1.msra.mxu0 0.0
        %1052 = vmatprep.subr.mxu0 0.0
        %1053 = vmatpush1.msra.mxu0 0.0
        %1054 = vmatprep.subr.mxu0 0.0
        %1055 = vmatpush1.msra.mxu0 0.0
        %1056 = vmatprep.subr.mxu0 0.0
        %1057 = vmatpush1.msra.mxu0 0.0
        %1058 = vmatprep.subr.mxu0 0.0
        %1059 = vmatpush1.msra.mxu0 0.0
        %1060 = vmatprep.subr.mxu0 0.0
        %1061 = vmatpush1.msra.mxu0 %v995
        %1062 = vmatprep.subr.mxu0 0.0
        %1063 = vmatpush1.msra.mxu0 %v994
        %1064 = vmatprep.subr.mxu0 0.0
        %1065 = vmatpush1.msra.mxu0 %v993
        %1066 = vmatprep.subr.mxu0 0.0
        %1067 = vmatpush1.msra.mxu0 %v992
        %1068 = vmatprep.subr.mxu0 0.0
        %1069 = vmatpush2.msra.mxu0 0.0
        %1070 = vmatprep.subr.mxu0 0.0
        %1071 = vmatpush2.msra.mxu0 0.0
        %1072 = vmatprep.subr.mxu0 0.0
        %1073 = vmatpush2.msra.mxu0 0.0
        %1074 = vmatprep.subr.mxu0 0.0
        %1075 = vmatpush2.msra.mxu0 0.0
        %1076 = vmatprep.subr.mxu0 0.0
        %1077 = vmatpush2.msra.mxu0 0.0
        %1078 = vmatprep.subr.mxu0 0.0
        %1079 = vmatpush2.msra.mxu0 0.0
        %1080 = vmatprep.subr.mxu0 0.0
        %1081 = vmatpush2.msra.mxu0 0.0
        %1082 = vmatprep.subr.mxu0 0.0
        %1083 = vmatpush2.msra.mxu0 0.0
        %1084 = vmatprep.subr.mxu0 0.0
        %1085 = vmatpush2.msra.mxu0 0.0
        %1086 = vmatprep.subr.mxu0 0.0
        %1087 = vmatpush2.msra.mxu0 0.0
        %1088 = vmatprep.subr.mxu0 0.0
        %1089 = vmatpush2.msra.mxu0 0.0
        %1090 = vmatprep.subr.mxu0 0.0
        %1091 = vmatpush2.msra.mxu0 0.0
        %1092 = vmatprep.subr.mxu0 0.0
        %1093 = vmatpush2.msra.mxu0 0.0
        %1094 = vmatprep.subr.mxu0 0.0
        %1095 = vmatpush2.msra.mxu0 0.0
        %1096 = vmatprep.subr.mxu0 0.0
        %1097 = vmatpush2.msra.mxu0 0.0
        %1098 = vmatprep.subr.mxu0 0.0
        %1099 = vmatpush2.msra.mxu0 0.0
        %1100 = vmatprep.mubr.f32.mxu0 0.0
        %1101 = vmatmul.mubr.f32.gmra.mxu0 %v1025
        %v1102 = vpop.f32.mrf.mxu0
        %v1103 = vadd.f32 %v1007, %v1102
        %v1104 = vpop.f32.mrf.mxu0
        %1105 = vmatprep.mubr.f32.mxu0 0.0
        %1106 = vmatmul.mubr.f32.gmra.mxu0 %v1028
        %v1107 = vpop.f32.mrf.mxu0
        %v1108 = vadd.f32 %v1012, %v1107
        %v1109 = vpop.f32.mrf.mxu0
        %1110 = vmatprep.mubr.f32.mxu0 0.0
        %1111 = vmatmul.mubr.f32.gmra.mxu0 %v1031
        %v1112 = vpop.f32.mrf.mxu0
        %v1113 = vadd.f32 %v1017, %v1112
        %v1114 = vpop.f32.mrf.mxu0
        %1115 = vmatprep.mubr.f32.mxu0 0.0
        %1116 = vmatmul.mubr.f32.gmra.mxu0 %v1034
        %v1117 = vpop.f32.mrf.mxu0
        %v1118 = vadd.f32 %v1022, %v1117
        %v1119 = vpop.f32.mrf.mxu0
        %1120 = vdwg.mxu0
        %v1121 = vmax.f32 %v1103, 0.0
        %v1122 = vmax.f32 %v1108, 0.0
        %v1123 = vmax.f32 %v1113, 0.0
        %v1124 = vmax.f32 %v1118, 0.0
        %1125 = vmax.xlane.f32.xlu0 %v1121
        %v1126 = vpop.xlane.xlu0 %1125
        %1127 = vmax.xlane.f32.xlu0 %v1122
        %v1128 = vpop.xlane.xlu0 %1127
        %1129 = vmax.xlane.f32.xlu0 %v1123
        %v1130 = vpop.xlane.xlu0 %1129
        %1131 = vmax.xlane.f32.xlu0 %v1124
        %v1132 = vpop.xlane.xlu0 %1131
        %v1133 = vlaneseq
        %v1134 = vand.u32 %v1133, 127
        %v1135 = vstv %s32
        %vm1136 = vcmp.eq.s32.totalorder %v1134, %v1135
        %v1137 = vld [vmem:[#allocation2] sm:$0xff]
        %v1138 = vld [vmem:[#allocation2 + $0x8] sm:$0xff]
        %v1139 = vld [vmem:[#allocation2 + $0x10] sm:$0xff]
        %v1140 = vld [vmem:[#allocation2 + $0x18] sm:$0xff]
        %v1141 = vmax.f32 %v1137, %v1126
        %v1142 = vmax.f32 %v1138, %v1128
        %v1143 = vmax.f32 %v1139, %v1130
        %v1144 = vmax.f32 %v1140, %v1132
        %v1145 = vsel %vm1136, %v1141, %v1137
        %v1146 = vsel %vm1136, %v1142, %v1138
        %v1147 = vsel %vm1136, %v1143, %v1139
        %v1148 = vsel %vm1136, %v1144, %v1140
        %vm1149 = vcmask 15360
        %1150 = vst.msk [vmem:[#allocation2] sm:$0xff] %vm1149, %v1145
        %1151 = vst.msk [vmem:[#allocation2 + $0x8] sm:$0xff] %vm1149, %v1146
        %1152 = vst.msk [vmem:[#allocation2 + $0x10] sm:$0xff] %vm1149, %v1147
        %1153 = vst.msk [vmem:[#allocation2 + $0x18] sm:$0xff] %vm1149, %v1148
        %p1154 = scmp.eq.s32.totalorder %s32, 1
        %p1155 = scmp.eq.s32.totalorder %s33, 1
        %p1156 = pnand %p1154, %p1155
        %p1157 = pneg %p1156
        // Predicated region
        $region81: #{pointnet2_classifier.1} parent=75 // pred_check
          _
        $region82: #{pointnet2_classifier.1} parent=75 // pred_check_branch
          %1159 = sbr.rel (%p1156) target = $region84
        $region83: #{pointnet2_classifier.1} parent=75 // pred_region
          %v1160 = vld [vmem:[#allocation2] sm:$0xff]
          %v1161 = vld [vmem:[#allocation2 + $0x8] sm:$0xff]
          %v1162 = vld [vmem:[#allocation2 + $0x10] sm:$0xff]
          %v1163 = vld [vmem:[#allocation2 + $0x18] sm:$0xff]
          %v1164 = vld [vmem:[%s12] sm:$0xff]
          %v1165 = vld [vmem:[%s12 + $0x8] sm:$0x3]
          %v1166 = vld [vmem:[%s13] sm:$0xff]
          %v1167 = vld [vmem:[%s13 + $0x8] sm:$0x3]
          %1169 = vset.pattern.permute.xlu0 0
          %1170 = vperm.xlu0 %1169, %v1166
          %v1171 = vpop.permute.xlu0 %1170
          %1174 = vset.pattern.permute.xlu0 0
          %1175 = vperm.xlu0 %1174, %v1167
          %v1176 = vpop.permute.xlu0 %1175
          %v1179 = vsel %vm894, %v1164, 0
          %v1182 = vsel %vm894, %v1165, 0
          %1184 = vmatprep.subr.mxu0 0.0
          %1185 = vmatpush1.msra.mxu0 0.0
          %1186 = vmatprep.subr.mxu0 0.0
          %1187 = vmatpush1.msra.mxu0 0.0
          %1188 = vmatprep.subr.mxu0 0.0
          %1189 = vmatpush1.msra.mxu0 0.0
          %1190 = vmatprep.subr.mxu0 0.0
          %1191 = vmatpush1.msra.mxu0 0.0
          %1192 = vmatprep.subr.mxu0 0.0
          %1193 = vmatpush1.msra.mxu0 0.0
          %1194 = vmatprep.subr.mxu0 0.0
          %1195 = vmatpush1.msra.mxu0 0.0
          %1196 = vmatprep.subr.mxu0 0.0
          %1197 = vmatpush1.msra.mxu0 0.0
          %1198 = vmatprep.subr.mxu0 0.0
          %1199 = vmatpush1.msra.mxu0 0.0
          %1200 = vmatprep.subr.mxu0 0.0
          %1201 = vmatpush1.msra.mxu0 0.0
          %1202 = vmatprep.subr.mxu0 0.0
          %1203 = vmatpush1.msra.mxu0 0.0
          %1204 = vmatprep.subr.mxu0 0.0
          %1205 = vmatpush1.msra.mxu0 0.0
          %1206 = vmatprep.subr.mxu0 0.0
          %1207 = vmatpush1.msra.mxu0 0.0
          %1208 = vmatprep.subr.mxu0 0.0
          %1209 = vmatpush1.msra.mxu0 %v1163
          %1210 = vmatprep.subr.mxu0 0.0
          %1211 = vmatpush1.msra.mxu0 %v1162
          %1212 = vmatprep.subr.mxu0 0.0
          %1213 = vmatpush1.msra.mxu0 %v1161
          %1214 = vmatprep.subr.mxu0 0.0
          %1215 = vmatpush1.msra.mxu0 %v1160
          %1216 = vmatprep.subr.mxu0 0.0
          %1217 = vmatpush2.msra.mxu0 0.0
          %1218 = vmatprep.subr.mxu0 0.0
          %1219 = vmatpush2.msra.mxu0 0.0
          %1220 = vmatprep.subr.mxu0 0.0
          %1221 = vmatpush2.msra.mxu0 0.0
          %1222 = vmatprep.subr.mxu0 0.0
          %1223 = vmatpush2.msra.mxu0 0.0
          %1224 = vmatprep.subr.mxu0 0.0
          %1225 = vmatpush2.msra.mxu0 0.0
          %1226 = vmatprep.subr.mxu0 0.0
          %1227 = vmatpush2.msra.mxu0 0.0
          %1228 = vmatprep.subr.mxu0 0.0
          %1229 = vmatpush2.msra.mxu0 0.0
          %1230 = vmatprep.subr.mxu0 0.0
          %1231 = vmatpush2.msra.mxu0 0.0
          %1232 = vmatprep.subr.mxu0 0.0
          %1233 = vmatpush2.msra.mxu0 0.0
          %1234 = vmatprep.subr.mxu0 0.0
          %1235 = vmatpush2.msra.mxu0 0.0
          %1236 = vmatprep.subr.mxu0 0.0
          %1237 = vmatpush2.msra.mxu0 0.0
          %1238 = vmatprep.subr.mxu0 0.0
          %1239 = vmatpush2.msra.mxu0 0.0
          %1240 = vmatprep.subr.mxu0 0.0
          %1241 = vmatpush2.msra.mxu0 0.0
          %1242 = vmatprep.subr.mxu0 0.0
          %1243 = vmatpush2.msra.mxu0 0.0
          %1244 = vmatprep.subr.mxu0 0.0
          %1245 = vmatpush2.msra.mxu0 0.0
          %1246 = vmatprep.subr.mxu0 0.0
          %1247 = vmatpush2.msra.mxu0 0.0
          %1248 = vmatprep.mubr.f32.mxu0 0.0
          %1249 = vmatmul.mubr.f32.gmra.mxu0 %v1179
          %v1250 = vpop.f32.mrf.mxu0
          %v1251 = vadd.f32 %v1171, %v1250
          %v1252 = vpop.f32.mrf.mxu0
          %1253 = vmatprep.mubr.f32.mxu0 0.0
          %1254 = vmatmul.mubr.f32.gmra.mxu0 %v1182
          %v1255 = vpop.f32.mrf.mxu0
          %v1256 = vadd.f32 %v1176, %v1255
          %v1257 = vpop.f32.mrf.mxu0
          %1258 = vdwg.mxu0
          %v1259 = vsel %vm1149, %v1251, -inf
          %vm1260 = vcmask 9216
          %v1261 = vsel %vm1260, %v1256, -inf
          %v1262 = vmax.f32 %v1259, %v1261
          %v1263 = vrot.slane %v1262, 4
          %v1264 = vmax.f32 %v1262, %v1263
          %v1265 = vrot.slane %v1264, 2
          %v1266 = vmax.f32 %v1264, %v1265
          %v1267 = vrot.slane %v1266, 1
          %v1268 = vmax.f32 %v1266, %v1267
          %v1269 = vsub.f32 %v1251, %v1268
          %v1270 = vsub.f32 %v1256, %v1268
          %v1271 = vmul.f32 %v1269, 1.442695
          %v1272 = vpow.pop %v1271
          %v1273 = vmul.f32 %v1270, 1.442695
          %v1274 = vpow.pop %v1273
          %v1275 = vsel %vm1149, %v1272, 0.0
          %v1276 = vsel %vm1260, %v1274, 0.0
          %v1277 = vadd.f32 %v1275, %v1276
          %v1278 = vrot.slane %v1277, 4
          %v1279 = vadd.f32 %v1277, %v1278
          %v1280 = vrot.slane %v1279, 2
          %v1281 = vadd.f32 %v1279, %v1280
          %v1282 = vrot.slane %v1281, 1
          %v1283 = vadd.f32 %v1281, %v1282
          %v1284 = vlog2.pop %v1283
          %v1285 = vmul.f32 %v1284, 0.6931472
          %v1286 = vadd.f32 %v1268, %v1285
          %v1287 = vsub.f32 %v1251, %v1286
          %v1288 = vsub.f32 %v1256, %v1286
          %1289 = vst.msk [vmem:[%s14] sm:$0xff] %vm1149, %v1287
          %1290 = vst.msk [vmem:[%s14 + $0x8] sm:$0x3] %vm1260, %v1288
          %v1291 = vlaneseq
          %v1292 = vshrl.u32 %v1291, 7
          %v1293 = vadd.s32 %v1292, 8
          %v1294 = vld [vmem:[%s0] sm:$0x1]
          %v1295 = vlaneseq
          %v1296 = vshrl.u32 %v1295, 7
          %v1297 = vsub.s32 0, %v1296
          %v1298 = vrot.slane %v1294, %v1297
          %vm1299 = vcmp.eq.s32.totalorder %v1292, %v1298
          %vm1300 = vcmp.eq.s32.totalorder %v1293, %v1298
          %v1301 = vsel %vm1299, 1, 0
          %v1302 = vsel %vm1300, 1, 0
          %v1303 = vcvt.s32.f32 %v1301
          %v1304 = vcvt.s32.f32 %v1302
          %v1305 = vmul.f32 %v1287, %v1303
          %v1306 = vmul.f32 %v1288, %v1304
          %v1307 = vsel %vm1149, %v1305, 0.0
          %v1308 = vsel %vm1260, %v1306, 0.0
          %v1309 = vadd.f32 %v1307, %v1308
          %1310 = vadd.xlane.f32.xlu0 %v1309
          %v1311 = vpop.xlane.xlu0 %1310
          %v1312 = vrot.slane %v1311, 4
          %v1313 = vadd.f32 %v1311, %v1312
          %v1314 = vrot.slane %v1313, 2
          %v1315 = vadd.f32 %v1313, %v1314
          %v1316 = vrot.slane %v1315, 1
          %v1317 = vadd.f32 %v1315, %v1316
          %s1318 = vtos %v1317
          %s1319 = ssub.f32 0.0, %s1318
          %v1320 = vrcp.pop 2.0
          %s1321 = vtos %v1320
          %s1322 = smul.f32 %s1319, %s1321
          %v1323 = vstv %s1322
          %vm1324 = vcmask 0
          %1325 = vst.msk [vmem:[#allocation3] sm:$0x1] %vm1324, %v1323
        $region84: #{pointnet2_classifier.1} parent=75 // pred_fallthru
          _
        // Predicated region
        $region85: #{pointnet2_classifier.1} parent=75 // pred_check
          %p1326 = pneg %p361
        $region86: #{pointnet2_classifier.1} parent=75 // pred_check_branch
          %1328 = sbr.rel (%p1326) target = $region88
        $region87: #{pointnet2_classifier.1} parent=75 // pred_region
          _
        $region88: #{pointnet2_classifier.1} parent=75 // pred_fallthru
          _
        // Predicated region
        $region89: #{pointnet2_classifier.1} parent=75 // pred_check
          %p1329 = pneg %p382
        $region90: #{pointnet2_classifier.1} parent=75 // pred_check_branch
          %1331 = sbr.rel (%p1329) target = $region92
        $region91: #{pointnet2_classifier.1} parent=75 // pred_region
          %s1333 = ssub.s32 16, 16
          %1334 = vsyncadd [#allocation4], %s1333
          %s1336 = sshll.u32 [#allocation3], 4
          %s1337 = int_to_ptr.vmem [resolvable:$true] %s1336
          %1339 = dma.vmem_to_hbm [thread:$0]  %s1337, 16, %s15, [#allocation4]
        $region92: #{pointnet2_classifier.1} parent=75 // pred_fallthru
          _
        // Predicated region
        $region93: #{pointnet2_classifier.1} parent=75 // pred_check
          %p1340 = pneg %p361
        $region94: #{pointnet2_classifier.1} parent=75 // pred_check_branch
          %1342 = sbr.rel (%p1340) target = $region96
        $region95: #{pointnet2_classifier.1} parent=75 // pred_region
          _
        $region96: #{pointnet2_classifier.1} parent=75 // pred_fallthru
          _
        // Predicated region
        $region97: #{pointnet2_classifier.1} parent=75 // pred_check
          %p1343 = pneg %p382
        $region98: #{pointnet2_classifier.1} parent=75 // pred_check_branch
          %1345 = sbr.rel (%p1343) target = $region100
        $region99: #{pointnet2_classifier.1} parent=75 // pred_region
          %1346 = dma.done [#allocation4], 16
        $region100: #{pointnet2_classifier.1} parent=75 // pred_fallthru
          _
      $region76: #{pointnet2_classifier.1} parent=5 // pred_fallthru
        _
      %p1347 = scmp.le.s32.totalorder 2, %s23
      // Predicated region
      $region101: #{pointnet2_classifier.1} parent=5 // pred_check
        %p1348 = pneg %p1347
      $region102: #{pointnet2_classifier.1} parent=5 // pred_check_branch
        %1350 = sbr.rel (%p1348) target = $region104
      $region103: #{pointnet2_classifier.1} parent=5 // pred_region
        %s1351 = ssub.s32 %s23, 2
      $region104: #{pointnet2_classifier.1} parent=5 // pred_fallthru
        _
    $region6: #{pointnet2_classifier.1} parent=1 // loop_footer
      %s27 = sadd.s32 1, %s23
    $region7: #{pointnet2_classifier.1} parent=1 // loop_footer_branch
      %22 = sbr.rel target = $region3
    $region8: #{pointnet2_classifier.1} parent=1 // loop_exit
      _
    %1352 = vsyncpa [#allocation4], 1
    %s1353 = scalar_lea.sflag [#allocation4], 1
    %1354 = vsyncpa %s1353, 1

</llo_original>
